<compile_context>
chip_gen: v6e
topology: v6e:2x2x1
jax: 0.10.0
libtpu: 0.0.40
codegen_flags: <defaults>
</compile_context>

<pallas_src>
import functools

import jax
import jax.numpy as jnp
from jax.experimental import pallas as pl
from jax.experimental.pallas import tpu as pltpu


# Tap order (dy, dx) matches the (ky, kx) row-major order of the 3x3 weight.
_TAPS = tuple((dy, dx) for dy in (-1, 0, 1) for dx in (-1, 0, 1))


def _round_up(x, m):
    return (x + m - 1) // m * m


def _pick_block_rows(H, W):
    """Largest divisor of H (<= H//2 so the grid has >= 2 row blocks for
    pipelining / megacore) whose flattened row count is sublane-aligned and
    keeps the per-step slab modest.  Falls back to whole-image blocks."""
    best = None
    for rh in range(1, max(H // 2, 1) + 1):
        if H % rh == 0 and (rh * W) % 8 == 0 and rh * W <= 2048:
            best = rh
    return best if best is not None else H


def _vmem_limit_bytes():
    try:
        cap = int(pltpu.get_tpu_info().vmem_capacity_bytes)
    except Exception:  # pragma: no cover - conservative fallback
        cap = 64 * 1024 * 1024
    # ~3/4 of physical VMEM: ~48 MiB on v7x, ~96 MiB on v5e/v6e.
    return int(min(100 * 1024 * 1024, cap * 3 // 4))


# ----------------------------------------------------------------------------
# Fused bottleneck kernel (one row block of one image per grid step)
# ----------------------------------------------------------------------------
def _make_bottleneck_kernel(M, Mw, RHW, W, dil, Pp, has_downsample):
    dW = dil * W

    def kernel(*refs):
        if has_downsample:
            (x_ref, w1_ref, w2_ref, w3_ref, wd_ref,
             b1_ref, b2_ref, b3_ref, bd_ref, o_ref) = refs
        else:
            (x_ref, w1_ref, w2_ref, w3_ref,
             b1_ref, b2_ref, b3_ref, o_ref) = refs

        rb = pl.program_id(1)
        start = rb * RHW
        if RHW % 8 == 0:
            start = pl.multiple_of(start, 8)

        # Window: this block's rows plus a +/- dilation image-row halo
        # (x is row-padded in the wrapper so the window is always in bounds).
        xw = x_ref[pl.ds(start, Mw), :]                       # [Mw, Cin] bf16

        # ---- stage 1: 1x1 conv (BN scale folded into w1) + bias + ReLU -----
        a1 = jnp.dot(xw, w1_ref[...], preferred_element_type=jnp.float32)
        y1 = jnp.maximum(a1 + b1_ref[...], 0.0)

        # Rows falling in the zero padding above/below the image must feed the
        # 3x3 conv with exact zeros (conv zero padding), so zero their y1.
        li = jax.lax.broadcasted_iota(jnp.int32, (Mw, 1), 0)
        gidx = li + start                                     # padded flat idx
        row_ok = (gidx >= dW) & (gidx < dW + M)
        y1 = jnp.where(row_ok, y1, 0.0).astype(jnp.bfloat16)  # [Mw, Pp]

        # ---- stage 2: 3x3 dilated conv, im2col-free -------------------------
        # One wide MXU matmul makes all 9 tap responses; each lane-aligned tap
        # slab is shifted in-register with an XLU roll and edge-masked.
        z = jnp.dot(y1, w2_ref[...],
                    preferred_element_type=jnp.float32)       # [Mw, 9*Pp]

        col = li % W
        ml = (col >= dil).astype(jnp.float32)       # tap reads from the left
        mr = (col < W - dil).astype(jnp.float32)    # tap reads from the right

        acc2 = jnp.zeros((Mw, Pp), jnp.float32)
        for t, (dy, dx) in enumerate(_TAPS):
            s = (dy * W + dx) * dil
            zt = pltpu.roll(z[:, t * Pp:(t + 1) * Pp],
                            shift=(-(dW + s)) % Mw, axis=0)
            if dx < 0:
                zt = zt * ml
            elif dx > 0:
                zt = zt * mr
            acc2 = acc2 + zt
        y2 = jnp.maximum(acc2[:RHW, :] + b2_ref[...],
                         0.0).astype(jnp.bfloat16)            # [RHW, Pp]

        # ---- stage 3: 1x1 conv + bias + residual + ReLU ---------------------
        a3 = jnp.dot(y2, w3_ref[...], preferred_element_type=jnp.float32)
        xc = x_ref[pl.ds(start + dW, RHW), :]                 # centre rows
        if has_downsample:
            res = jnp.dot(xc, wd_ref[...],
                          preferred_element_type=jnp.float32) + bd_ref[...]
        else:
            res = xc.astype(jnp.float32)
        o_ref[...] = jnp.maximum(a3 + b3_ref[...] + res, 0.0).astype(o_ref.dtype)

    return kernel


# ----------------------------------------------------------------------------
# Wrappers
# ----------------------------------------------------------------------------
def bottleneck_forward_nhwc(x_nhwc, params, stride=1, dilation=1):
    """Fused bottleneck on a channels-last [B, H, W, Cin] tensor.
    Chained blocks should call this directly to avoid per-block NCHW<->NHWC
    transposes (layout change only at network boundaries)."""
    if stride != 1:
        raise NotImplementedError("stride>1 path not implemented")  # TODO(synk)

    B, H, W, Cin = x_nhwc.shape
    d = dilation
    M = H * W
    Pp = params["w1"].shape[1]
    Cout = params["w3"].shape[1]
    has_ds = "wd" in params
    if not has_ds:
        assert Cin == Cout, "identity residual needs inplanes == 4*planes"

    # Pad `dilation` ghost rows top/bottom once; fuses with the bf16 cast.
    xb = x_nhwc.astype(jnp.bfloat16)
    xp = jnp.pad(xb, ((0, 0), (d, d), (0, 0), (0, 0)))
    Mpad = (H + 2 * d) * W
    xf = xp.reshape(B, Mpad, Cin)

    RH = _pick_block_rows(H, W)          # image rows per grid step
    NR = H // RH
    RHW = RH * W                         # output rows per grid step
    Mw = (RH + 2 * d) * W                # rows incl. halo processed per step

    kernel = _make_bottleneck_kernel(M, Mw, RHW, W, d, Pp, has_ds)

    def bcast_spec(a):
        return pl.BlockSpec(a.shape, lambda b, r, n=a.ndim: (0,) * n)

    in_arrays = [xf, params["w1"], params["w2cat"], params["w3"]]
    if has_ds:
        in_arrays.append(params["wd"])
    in_arrays += [params["b1"], params["b2"], params["b3"]]
    if has_ds:
        in_arrays.append(params["bd"])

    in_specs = [pl.BlockSpec((None, Mpad, Cin), lambda b, r: (b, 0, 0))]
    in_specs += [bcast_spec(a) for a in in_arrays[1:]]

    out = pl.pallas_call(
        kernel,
        out_shape=jax.ShapeDtypeStruct((B, M, Cout), jnp.bfloat16),
        grid=(B, NR),
        in_specs=in_specs,
        out_specs=pl.BlockSpec((None, RHW, Cout), lambda b, r: (b, r, 0)),
        compiler_params=pltpu.CompilerParams(
            dimension_semantics=("parallel", "parallel"),
            vmem_limit_bytes=_vmem_limit_bytes()),
    )(*in_arrays)

    return out.reshape(B, H, W, Cout)


@functools.partial(jax.jit, static_argnames=("stride", "dilation"))
def bottleneck_forward(x_nchw, params, stride=1, dilation=1):
    """NCHW wrapper matching the PyTorch module interface."""
    x = jnp.transpose(x_nchw, (0, 2, 3, 1))
    y = bottleneck_forward_nhwc(x, params, stride, dilation)
    return jnp.transpose(y, (0, 3, 1, 2))


# ----------------------------------------------------------------------------
# Deterministic parameter init (shapes per the PyTorch __init__).
# BN folded to scale/bias; scales folded into weights (f32, then bf16 cast);
# stage-1/2 widths padded to a 128-lane multiple Pp with inert zeros.
# ----------------------------------------------------------------------------
def init_params(key, inplanes, planes, eps=1e-5, downsample=False):
    ks = jax.random.split(key, 20)
    w1_t = 0.1 * jax.random.normal(ks[0], (planes, inplanes, 1, 1), jnp.float32)
    w2_t = 0.1 * jax.random.normal(ks[1], (planes, planes, 3, 3), jnp.float32)
    w3_t = 0.1 * jax.random.normal(ks[2], (planes * 4, planes, 1, 1), jnp.float32)

    def bn_fold(i, c):
        gamma = 1.0 + 0.1 * jax.random.normal(ks[i], (c,), jnp.float32)
        beta = 0.1 * jax.random.normal(ks[i + 1], (c,), jnp.float32)
        mean = 0.1 * jax.random.normal(ks[i + 2], (c,), jnp.float32)
        var = jnp.abs(jax.random.normal(ks[i + 3], (c,), jnp.float32)) + 0.5
        scale = gamma / jnp.sqrt(var + eps)
        bias = beta - mean * scale
        return scale.reshape(1, c), bias.reshape(1, c)

    s1, b1 = bn_fold(3, planes)
    s2, b2 = bn_fold(7, planes)
    s3, b3 = bn_fold(11, planes * 4)

    P = planes
    Pp = _round_up(P, 128)               # lane-align each stage-2 tap slab

    def pad_cols(a, n):
        return jnp.pad(a, ((0, 0), (0, n - a.shape[1])))

    def pad_rows(a, n):
        return jnp.pad(a, ((0, n - a.shape[0]), (0, 0)))

    w1 = pad_cols(w1_t[:, :, 0, 0].T * s1, Pp).astype(jnp.bfloat16)  # [Cin,Pp]
    slabs = []
    for ky in range(3):
        for kx in range(3):
            slab = w2_t[:, :, ky, kx].T * s2                         # [P, P]
            slabs.append(pad_cols(pad_rows(slab, Pp), Pp))
    w2cat = jnp.concatenate(slabs, axis=1).astype(jnp.bfloat16)      # [Pp,9Pp]
    w3 = pad_rows(w3_t[:, :, 0, 0].T * s3, Pp).astype(jnp.bfloat16)  # [Pp,4P]

    params = dict(w1=w1, w2cat=w2cat, w3=w3,
                  b1=pad_cols(b1, Pp), b2=pad_cols(b2, Pp), b3=b3)
    raw = dict(w1_t=w1_t, w2_t=w2_t, w3_t=w3_t,
               s1=s1, b1=b1, s2=s2, b2=b2, s3=s3, b3=b3)

    if downsample:
        wd_t = 0.1 * jax.random.normal(ks[15], (planes * 4, inplanes, 1, 1),
                                       jnp.float32)
        sd, bd = bn_fold(16, planes * 4)
        params.update(wd=(wd_t[:, :, 0, 0].T * sd).astype(jnp.bfloat16), bd=bd)
        raw.update(wd_t=wd_t, sd=sd, bd=bd)
    return params, raw


# ----------------------------------------------------------------------------
# Pure-JAX reference (XLA convs), mirroring the kernel's bf16 cast points
# ----------------------------------------------------------------------------
def reference_forward(x_nchw, raw, stride=1, dilation=1, downsample=False):
    x = jnp.transpose(x_nchw, (0, 2, 3, 1))
    xb = x.astype(jnp.bfloat16)

    def conv(z, wt, s, d, pad):
        w = jnp.transpose(wt, (2, 3, 1, 0)).astype(jnp.bfloat16)  # HWIO
        return jax.lax.conv_general_dilated(
            z.astype(jnp.bfloat16), w, (s, s), [(pad, pad), (pad, pad)],
            rhs_dilation=(d, d),
            dimension_numbers=("NHWC", "HWIO", "NHWC"),
            preferred_element_type=jnp.float32)

    y = jnp.maximum(conv(xb, raw["w1_t"], 1, 1, 0) * raw["s1"] + raw["b1"], 0.0)
    y = jnp.maximum(conv(y, raw["w2_t"], stride, dilation, dilation)
                    * raw["s2"] + raw["b2"], 0.0)
    y = conv(y, raw["w3_t"], 1, 1, 0) * raw["s3"] + raw["b3"]
    if downsample:
        res = conv(xb, raw["wd_t"], stride, 1, 0) * raw["sd"] + raw["bd"]
    else:
        res = xb.astype(jnp.float32)
    y = jnp.maximum(y + res, 0.0)
    return jnp.transpose(y, (0, 3, 1, 2))


# ----------------------------------------------------------------------------
if __name__ == "__main__":
    key = jax.random.PRNGKey(0)
    k_x1, k_p1, k_x2, k_p2 = jax.random.split(key, 4)

    # --- test 1: identity residual (inplanes == 4*planes), dilation=1 -------
    B, inplanes, H, W = 2, 16, 16, 16
    planes = 4
    x1 = jax.random.normal(k_x1, (B, inplanes, H, W), jnp.float32)
    params1, raw1 = init_params(k_p1, inplanes, planes)

    out1 = jax.block_until_ready(bottleneck_forward(x1, params1))
    ref1 = jax.block_until_ready(reference_forward(x1, raw1))
    assert out1.shape == (B, planes * 4, H, W)
    assert jnp.allclose(out1.astype(jnp.float32), ref1, atol=2e-2, rtol=2e-2), (
        float(jnp.max(jnp.abs(out1.astype(jnp.float32) - ref1))))

    # --- test 2: downsample residual (inplanes != 4*planes), dilation=2 -----
    B2, inplanes2, H2, W2 = 2, 8, 16, 16
    planes2 = 4
    x2 = jax.random.normal(k_x2, (B2, inplanes2, H2, W2), jnp.float32)
    params2, raw2 = init_params(k_p2, inplanes2, planes2, downsample=True)

    out2 = jax.block_until_ready(bottleneck_forward(x2, params2, dilation=2))
    ref2 = jax.block_until_ready(
        reference_forward(x2, raw2, dilation=2, downsample=True))
    assert out2.shape == (B2, planes2 * 4, H2, W2)
    assert jnp.allclose(out2.astype(jnp.float32), ref2, atol=2e-2, rtol=2e-2), (
        float(jnp.max(jnp.abs(out2.astype(jnp.float32) - ref2))))

    print("KERNEL_OK")
</pallas_src>

<mosaic_0001>
module attributes {stable_mosaic.version = 11 : i64} {
  func.func @kernel(%arg0: i32, %arg1: i32, %arg2: memref<1x288x16xbf16, #tpu.memory_space<vmem>>, %arg3: memref<16x128xbf16, #tpu.memory_space<vmem>>, %arg4: memref<128x1152xbf16, #tpu.memory_space<vmem>>, %arg5: memref<128x16xbf16, #tpu.memory_space<vmem>>, %arg6: memref<1x128xf32, #tpu.memory_space<vmem>>, %arg7: memref<1x128xf32, #tpu.memory_space<vmem>>, %arg8: memref<1x16xf32, #tpu.memory_space<vmem>>, %arg9: memref<1x128x16xbf16, #tpu.memory_space<vmem>>) attributes {dimension_semantics = [#tpu.dimension_semantics<parallel>, #tpu.dimension_semantics<parallel>], iteration_bounds = array<i64: 2, 2>, scalar_prefetch = 0 : i64, scratch_operands = 0 : i64, tpu.core_type = #tpu.core_type<tc>, window_params = [{transform_indices = @transform_0, window_bounds = array<i64: 1, 288, 16>}, {pipeline_mode = #tpu.pipeline_mode<synchronous>, transform_indices = @transform_1, window_bounds = array<i64: 16, 128>}, {pipeline_mode = #tpu.pipeline_mode<synchronous>, transform_indices = @transform_2, window_bounds = array<i64: 128, 1152>}, {pipeline_mode = #tpu.pipeline_mode<synchronous>, transform_indices = @transform_3, window_bounds = array<i64: 128, 16>}, {pipeline_mode = #tpu.pipeline_mode<synchronous>, transform_indices = @transform_4, window_bounds = array<i64: 1, 128>}, {pipeline_mode = #tpu.pipeline_mode<synchronous>, transform_indices = @transform_5, window_bounds = array<i64: 1, 128>}, {pipeline_mode = #tpu.pipeline_mode<synchronous>, transform_indices = @transform_6, window_bounds = array<i64: 1, 16>}, {transform_indices = @transform_7, window_bounds = array<i64: 1, 128, 16>}]} {
    %c128_i32 = arith.constant 128 : i32
    %0 = arith.muli %arg1, %c128_i32 : i32
    %1 = tpu.assume_multiple %0, 8 : i32
    %c0 = arith.constant 0 : index
    %2 = arith.index_cast %1 : i32 to index
    %c0_0 = arith.constant 0 : index
    %3 = vector.load %arg2[%c0, %2, %c0_0] : memref<1x288x16xbf16, #tpu.memory_space<vmem>>, vector<1x160x16xbf16>
    %4 = vector.shape_cast %3 : vector<1x160x16xbf16> to vector<160x16xbf16>
    %c0_1 = arith.constant 0 : index
    %c0_2 = arith.constant 0 : index
    %5 = vector.load %arg3[%c0_1, %c0_2] : memref<16x128xbf16, #tpu.memory_space<vmem>>, vector<16x128xbf16>
    %cst = arith.constant dense<0.000000e+00> : vector<160x128xf32>
    %6 = tpu.matmul %4, %5, %cst {dimension_numbers = #tpu.dot_dimension_numbers<[1], [0], [0], [1], [0, 0, 1, 1], [], []>} : vector<160x16xbf16>, vector<16x128xbf16>, vector<160x128xf32> -> vector<160x128xf32>
    %c0_3 = arith.constant 0 : index
    %c0_4 = arith.constant 0 : index
    %7 = vector.load %arg6[%c0_3, %c0_4] : memref<1x128xf32, #tpu.memory_space<vmem>>, vector<1x128xf32>
    %8 = vector.broadcast %7 : vector<1x128xf32> to vector<160x128xf32>
    %9 = arith.addf %6, %8 : vector<160x128xf32>
    %cst_5 = arith.constant 0.000000e+00 : f32
    %10 = vector.broadcast %cst_5 : f32 to vector<160x128xf32>
    %11 = arith.maximumf %9, %10 : vector<160x128xf32>
    %12 = tpu.iota {dimensions = array<i32: 0>} : vector<160x1xi32>
    %13 = vector.broadcast %1 : i32 to vector<160x1xi32>
    %14 = arith.addi %12, %13 : vector<160x1xi32>
    %c16_i32 = arith.constant 16 : i32
    %15 = vector.broadcast %c16_i32 : i32 to vector<160x1xi32>
    %16 = arith.cmpi sge, %14, %15 : vector<160x1xi32>
    %c272_i32 = arith.constant 272 : i32
    %17 = vector.broadcast %c272_i32 : i32 to vector<160x1xi32>
    %18 = arith.cmpi slt, %14, %17 : vector<160x1xi32>
    %19 = arith.andi %16, %18 : vector<160x1xi1>
    %cst_6 = arith.constant 0.000000e+00 : f32
    %20 = vector.shape_cast %19 : vector<160x1xi1> to vector<160x1xi1>
    %21 = vector.broadcast %20 : vector<160x1xi1> to vector<160x128xi1>
    %22 = vector.broadcast %cst_6 : f32 to vector<160x128xf32>
    %23 = arith.select %21, %11, %22 : vector<160x128xi1>, vector<160x128xf32>
    %24 = arith.truncf %23 : vector<160x128xf32> to vector<160x128xbf16>
    %c0_7 = arith.constant 0 : index
    %c0_8 = arith.constant 0 : index
    %25 = vector.load %arg4[%c0_7, %c0_8] : memref<128x1152xbf16, #tpu.memory_space<vmem>>, vector<128x1152xbf16>
    %cst_9 = arith.constant dense<0.000000e+00> : vector<160x1152xf32>
    %26 = tpu.matmul %24, %25, %cst_9 {dimension_numbers = #tpu.dot_dimension_numbers<[1], [0], [0], [1], [0, 0, 1, 1], [], []>} : vector<160x128xbf16>, vector<128x1152xbf16>, vector<160x1152xf32> -> vector<160x1152xf32>
    %c16_i32_10 = arith.constant 16 : i32
    %c0_i32 = arith.constant 0 : i32
    %27 = arith.cmpi eq, %c16_i32_10, %c0_i32 : i32
    %c1_i32 = arith.constant 1 : i32
    %28 = arith.select %27, %c1_i32, %c16_i32_10 : i32
    %29 = vector.broadcast %28 : i32 to vector<160x1xi32>
    %30 = arith.remsi %12, %29 : vector<160x1xi32>
    %c0_i32_11 = arith.constant 0 : i32
    %31 = vector.broadcast %c0_i32_11 : i32 to vector<160x1xi32>
    %32 = arith.cmpi ne, %30, %31 : vector<160x1xi32>
    %c0_i32_12 = arith.constant 0 : i32
    %33 = vector.broadcast %c0_i32_12 : i32 to vector<160x1xi32>
    %34 = arith.cmpi slt, %30, %33 : vector<160x1xi32>
    %c0_i32_13 = arith.constant 0 : i32
    %35 = arith.cmpi slt, %28, %c0_i32_13 : i32
    %36 = vector.broadcast %35 : i1 to vector<160x1xi1>
    %37 = vector.broadcast %36 : vector<160x1xi1> to vector<160x1xi1>
    %38 = arith.xori %34, %37 : vector<160x1xi1>
    %39 = arith.andi %38, %32 : vector<160x1xi1>
    %40 = vector.broadcast %28 : i32 to vector<160x1xi32>
    %41 = arith.addi %30, %40 : vector<160x1xi32>
    %42 = arith.select %39, %41, %30 : vector<160x1xi1>, vector<160x1xi32>
    %c1_i32_14 = arith.constant 1 : i32
    %43 = vector.broadcast %c1_i32_14 : i32 to vector<160x1xi32>
    %44 = arith.cmpi sge, %42, %43 : vector<160x1xi32>
    %45 = arith.extui %44 : vector<160x1xi1> to vector<160x1xi32>
    %46 = arith.sitofp %45 : vector<160x1xi32> to vector<160x1xf32>
    %c15_i32 = arith.constant 15 : i32
    %47 = vector.broadcast %c15_i32 : i32 to vector<160x1xi32>
    %48 = arith.cmpi slt, %42, %47 : vector<160x1xi32>
    %49 = arith.extui %48 : vector<160x1xi1> to vector<160x1xi32>
    %50 = arith.sitofp %49 : vector<160x1xi32> to vector<160x1xf32>
    %cst_15 = arith.constant 0.000000e+00 : f32
    %51 = vector.broadcast %cst_15 : f32 to vector<160x128xf32>
    %52 = vector.extract_strided_slice %26 {offsets = [0, 0], sizes = [160, 128], strides = [1, 1]} : vector<160x1152xf32> to vector<160x128xf32>
    %c1_i32_16 = arith.constant 1 : i32
    %53 = tpu.dynamic_rotate %52 by %c1_i32_16 dim 0 : vector<160x128xf32>, i32 -> vector<160x128xf32>
    %54 = vector.broadcast %46 : vector<160x1xf32> to vector<160x128xf32>
    %55 = arith.mulf %53, %54 : vector<160x128xf32>
    %56 = arith.addf %51, %55 : vector<160x128xf32>
    %57 = vector.extract_strided_slice %26 {offsets = [0, 128], sizes = [160, 128], strides = [1, 1]} : vector<160x1152xf32> to vector<160x128xf32>
    %c0_i32_17 = arith.constant 0 : i32
    %58 = tpu.dynamic_rotate %57 by %c0_i32_17 dim 0 : vector<160x128xf32>, i32 -> vector<160x128xf32>
    %59 = arith.addf %56, %58 : vector<160x128xf32>
    %60 = vector.extract_strided_slice %26 {offsets = [0, 256], sizes = [160, 128], strides = [1, 1]} : vector<160x1152xf32> to vector<160x128xf32>
    %c159_i32 = arith.constant 159 : i32
    %61 = tpu.dynamic_rotate %60 by %c159_i32 dim 0 : vector<160x128xf32>, i32 -> vector<160x128xf32>
    %62 = vector.broadcast %50 : vector<160x1xf32> to vector<160x128xf32>
    %63 = arith.mulf %61, %62 : vector<160x128xf32>
    %64 = arith.addf %59, %63 : vector<160x128xf32>
    %65 = vector.extract_strided_slice %26 {offsets = [0, 384], sizes = [160, 128], strides = [1, 1]} : vector<160x1152xf32> to vector<160x128xf32>
    %c145_i32 = arith.constant 145 : i32
    %66 = tpu.dynamic_rotate %65 by %c145_i32 dim 0 : vector<160x128xf32>, i32 -> vector<160x128xf32>
    %67 = vector.broadcast %46 : vector<160x1xf32> to vector<160x128xf32>
    %68 = arith.mulf %66, %67 : vector<160x128xf32>
    %69 = arith.addf %64, %68 : vector<160x128xf32>
    %70 = vector.extract_strided_slice %26 {offsets = [0, 512], sizes = [160, 128], strides = [1, 1]} : vector<160x1152xf32> to vector<160x128xf32>
    %c144_i32 = arith.constant 144 : i32
    %71 = tpu.dynamic_rotate %70 by %c144_i32 dim 0 : vector<160x128xf32>, i32 -> vector<160x128xf32>
    %72 = arith.addf %69, %71 : vector<160x128xf32>
    %73 = vector.extract_strided_slice %26 {offsets = [0, 640], sizes = [160, 128], strides = [1, 1]} : vector<160x1152xf32> to vector<160x128xf32>
    %c143_i32 = arith.constant 143 : i32
    %74 = tpu.dynamic_rotate %73 by %c143_i32 dim 0 : vector<160x128xf32>, i32 -> vector<160x128xf32>
    %75 = vector.broadcast %50 : vector<160x1xf32> to vector<160x128xf32>
    %76 = arith.mulf %74, %75 : vector<160x128xf32>
    %77 = arith.addf %72, %76 : vector<160x128xf32>
    %78 = vector.extract_strided_slice %26 {offsets = [0, 768], sizes = [160, 128], strides = [1, 1]} : vector<160x1152xf32> to vector<160x128xf32>
    %c129_i32 = arith.constant 129 : i32
    %79 = tpu.dynamic_rotate %78 by %c129_i32 dim 0 : vector<160x128xf32>, i32 -> vector<160x128xf32>
    %80 = vector.broadcast %46 : vector<160x1xf32> to vector<160x128xf32>
    %81 = arith.mulf %79, %80 : vector<160x128xf32>
    %82 = arith.addf %77, %81 : vector<160x128xf32>
    %83 = vector.extract_strided_slice %26 {offsets = [0, 896], sizes = [160, 128], strides = [1, 1]} : vector<160x1152xf32> to vector<160x128xf32>
    %c128_i32_18 = arith.constant 128 : i32
    %84 = tpu.dynamic_rotate %83 by %c128_i32_18 dim 0 : vector<160x128xf32>, i32 -> vector<160x128xf32>
    %85 = arith.addf %82, %84 : vector<160x128xf32>
    %86 = vector.extract_strided_slice %26 {offsets = [0, 1024], sizes = [160, 128], strides = [1, 1]} : vector<160x1152xf32> to vector<160x128xf32>
    %c127_i32 = arith.constant 127 : i32
    %87 = tpu.dynamic_rotate %86 by %c127_i32 dim 0 : vector<160x128xf32>, i32 -> vector<160x128xf32>
    %88 = vector.broadcast %50 : vector<160x1xf32> to vector<160x128xf32>
    %89 = arith.mulf %87, %88 : vector<160x128xf32>
    %90 = arith.addf %85, %89 : vector<160x128xf32>
    %91 = vector.extract_strided_slice %90 {offsets = [0, 0], sizes = [128, 128], strides = [1, 1]} : vector<160x128xf32> to vector<128x128xf32>
    %c0_19 = arith.constant 0 : index
    %c0_20 = arith.constant 0 : index
    %92 = vector.load %arg7[%c0_19, %c0_20] : memref<1x128xf32, #tpu.memory_space<vmem>>, vector<1x128xf32>
    %93 = vector.broadcast %92 : vector<1x128xf32> to vector<128x128xf32>
    %94 = arith.addf %91, %93 : vector<128x128xf32>
    %cst_21 = arith.constant 0.000000e+00 : f32
    %95 = vector.broadcast %cst_21 : f32 to vector<128x128xf32>
    %96 = arith.maximumf %94, %95 : vector<128x128xf32>
    %97 = arith.truncf %96 : vector<128x128xf32> to vector<128x128xbf16>
    %c0_22 = arith.constant 0 : index
    %c0_23 = arith.constant 0 : index
    %98 = vector.load %arg5[%c0_22, %c0_23] : memref<128x16xbf16, #tpu.memory_space<vmem>>, vector<128x16xbf16>
    %cst_24 = arith.constant dense<0.000000e+00> : vector<128x16xf32>
    %99 = tpu.matmul %97, %98, %cst_24 {dimension_numbers = #tpu.dot_dimension_numbers<[1], [0], [0], [1], [0, 0, 1, 1], [], []>} : vector<128x128xbf16>, vector<128x16xbf16>, vector<128x16xf32> -> vector<128x16xf32>
    %c16_i32_25 = arith.constant 16 : i32
    %100 = arith.addi %1, %c16_i32_25 : i32
    %c0_26 = arith.constant 0 : index
    %101 = arith.index_cast %100 : i32 to index
    %c0_27 = arith.constant 0 : index
    %102 = vector.load %arg2[%c0_26, %101, %c0_27] : memref<1x288x16xbf16, #tpu.memory_space<vmem>>, vector<1x128x16xbf16>
    %103 = vector.shape_cast %102 : vector<1x128x16xbf16> to vector<128x16xbf16>
    %104 = arith.extf %103 : vector<128x16xbf16> to vector<128x16xf32>
    %c0_28 = arith.constant 0 : index
    %c0_29 = arith.constant 0 : index
    %105 = vector.load %arg8[%c0_28, %c0_29] : memref<1x16xf32, #tpu.memory_space<vmem>>, vector<1x16xf32>
    %106 = vector.broadcast %105 : vector<1x16xf32> to vector<128x16xf32>
    %107 = arith.addf %99, %106 : vector<128x16xf32>
    %108 = arith.addf %107, %104 : vector<128x16xf32>
    %cst_30 = arith.constant 0.000000e+00 : f32
    %109 = vector.broadcast %cst_30 : f32 to vector<128x16xf32>
    %110 = arith.maximumf %108, %109 : vector<128x16xf32>
    %111 = arith.truncf %110 : vector<128x16xf32> to vector<128x16xbf16>
    %c0_31 = arith.constant 0 : index
    %c0_32 = arith.constant 0 : index
    %c0_33 = arith.constant 0 : index
    %112 = vector.load %arg9[%c0_31, %c0_32, %c0_33] : memref<1x128x16xbf16, #tpu.memory_space<vmem>>, vector<1x128x16xbf16>
    %113 = vector.shape_cast %112 : vector<1x128x16xbf16> to vector<128x16xbf16>
    %114 = vector.shape_cast %111 : vector<128x16xbf16> to vector<1x128x16xbf16>
    tpu.vector_store %arg9[%c0_31, %c0_32, %c0_33], %114 {strides = array<i32>} : memref<1x128x16xbf16, #tpu.memory_space<vmem>>, vector<1x128x16xbf16>,
    return
  }
  func.func @transform_0(%arg0: i32, %arg1: i32) -> (i32, i32, i32) {
    %c0_i32 = arith.constant 0 : i32
    %c0_i32_0 = arith.constant 0 : i32
    %c0_i32_1 = arith.constant 0 : i32
    return %arg0, %c0_i32, %c0_i32_0 : i32, i32, i32
  }
  func.func @transform_1(%arg0: i32, %arg1: i32) -> (i32, i32) {
    %c0_i32 = arith.constant 0 : i32
    %c0_i32_0 = arith.constant 0 : i32
    %c0_i32_1 = arith.constant 0 : i32
    return %c0_i32, %c0_i32_0 : i32, i32
  }
  func.func @transform_2(%arg0: i32, %arg1: i32) -> (i32, i32) {
    %c0_i32 = arith.constant 0 : i32
    %c0_i32_0 = arith.constant 0 : i32
    %c0_i32_1 = arith.constant 0 : i32
    return %c0_i32, %c0_i32_0 : i32, i32
  }
  func.func @transform_3(%arg0: i32, %arg1: i32) -> (i32, i32) {
    %c0_i32 = arith.constant 0 : i32
    %c0_i32_0 = arith.constant 0 : i32
    %c0_i32_1 = arith.constant 0 : i32
    return %c0_i32, %c0_i32_0 : i32, i32
  }
  func.func @transform_4(%arg0: i32, %arg1: i32) -> (i32, i32) {
    %c0_i32 = arith.constant 0 : i32
    %c0_i32_0 = arith.constant 0 : i32
    %c0_i32_1 = arith.constant 0 : i32
    return %c0_i32, %c0_i32_0 : i32, i32
  }
  func.func @transform_5(%arg0: i32, %arg1: i32) -> (i32, i32) {
    %c0_i32 = arith.constant 0 : i32
    %c0_i32_0 = arith.constant 0 : i32
    %c0_i32_1 = arith.constant 0 : i32
    return %c0_i32, %c0_i32_0 : i32, i32
  }
  func.func @transform_6(%arg0: i32, %arg1: i32) -> (i32, i32) {
    %c0_i32 = arith.constant 0 : i32
    %c0_i32_0 = arith.constant 0 : i32
    %c0_i32_1 = arith.constant 0 : i32
    return %c0_i32, %c0_i32_0 : i32, i32
  }
  func.func @transform_7(%arg0: i32, %arg1: i32) -> (i32, i32, i32) {
    %c0_i32 = arith.constant 0 : i32
    %c0_i32_0 = arith.constant 0 : i32
    return %arg0, %arg1, %c0_i32 : i32, i32, i32
  }
}

</mosaic_0001>

<llo_original>
// kernel: bottleneck_forward.1
$region0: #{bottleneck_forward.1}
  #allocation0 [shape = 'u32[]', space=smem, size = 0x4, offset = 0x4, fixed_abs, tag = 'smem constant byte address 0x4 - core index']
  #allocation1 [shape = 'u32[144,128]{1,0:T(1,128)}', space=vmem, size = 0x12000, scoped, tag = 'internal scratch']
  %s0 = inlined_call_operand.vmem [shape: bf16[2,288,16], index: 0, kind: input, shape index: {}]
  %s1 = inlined_call_operand.vmem [shape: bf16[16,128], index: 1, kind: input, shape index: {}]
  %s2 = inlined_call_operand.vmem [shape: bf16[128,1152], index: 2, kind: input, shape index: {}]
  %s3 = inlined_call_operand.vmem [shape: bf16[128,16], index: 3, kind: input, shape index: {}]
  %s4 = inlined_call_operand.vmem [shape: f32[1,128], index: 4, kind: input, shape index: {}]
  %s5 = inlined_call_operand.vmem [shape: f32[1,128], index: 5, kind: input, shape index: {}]
  %s6 = inlined_call_operand.vmem [shape: f32[1,16], index: 6, kind: input, shape index: {}]
  %s7 = inlined_call_operand.vmem [shape: bf16[2,256,16], index: 7, kind: output, shape index: {}]
  %s8 = sld [smem:[#allocation0]]
  $region61: #{bottleneck_forward.1} parent=0
    _
  %s10 = ssub.s32 1, %s8
  %s11 = scalar_select 0, %s10, %s8
  loop: start=0, step=1, limit=6
  $region2: #{bottleneck_forward.1} parent=0 // loop_pre_header
    _
  $region3: #{bottleneck_forward.1} parent=0 // loop_header
    %s13 = sphi 0, %s17
    %p14 = scmp.ge.s32.totalorder %s13, 6
    %s20 = sphi 0, %s32
    %s21 = sphi 0, %s28
    %s22 = sphi 0, %s20
    %s23 = sphi 0, %s21
    %s24 = sphi 0, %s22
    %s25 = sphi 0, %s23
    %s35 = sphi 0, %s37
    %s38 = sphi 0, %s35
    %s39 = sphi 0, %s38
    %s55 = sphi 0, %s39
    %s59 = sphi 0, %s59
    %s61 = sphi 0, %s59
    %s62 = sphi 0, %s61
    %s76 = sphi 0, %s62
    %s80 = sphi 0, %s80
    %s82 = sphi 0, %s80
    %s83 = sphi 0, %s82
    %s97 = sphi 0, %s83
    %s101 = sphi 0, %s101
    %s103 = sphi 0, %s101
    %s104 = sphi 0, %s103
    %s118 = sphi 0, %s104
    %s122 = sphi 0, %s122
    %s124 = sphi 0, %s122
    %s125 = sphi 0, %s124
    %s139 = sphi 0, %s125
    %s143 = sphi 0, %s143
    %s145 = sphi 0, %s143
    %s146 = sphi 0, %s145
    %s160 = sphi 0, %s146
    %s164 = sphi 0, %s164
    %s166 = sphi 0, %s164
    %s167 = sphi 0, %s166
    %s181 = sphi 0, %s167
    %s189 = sphi 0, %s191
    %s192 = sphi 0, %s189
    %s193 = sphi 0, %s192
    %s209 = sphi 0, %s193
  $region4: #{bottleneck_forward.1} parent=0 // loop_header_branch
    %16 = sbr.rel (%p14) target = $region8
  $region5: #{bottleneck_forward.1} parent=0 // loop_body
    %s18 = ssub.s32 %s13, 1
    %s19 = ssub.s32 %s13, 2
    %s26 = sadd.s32 1, %s21
    %p27 = scmp.ge.s32.totalorder %s26, 2
    %s28 = scalar_select %p27, 0, %s26
    %s29 = sadd.s32 1, %s20
    %s30 = scalar_select %p27, %s29, %s20
    %p31 = scmp.ge.s32.totalorder %s30, 2
    %s32 = scalar_select %p31, 0, %s30
    %s33 = ssub.s32 %s20, %s32
    %p34 = scmp.eq.s32.totalorder %s33, 0
    %s36 = sadd.s32 %s35, 1
    %s37 = scalar_select %p34, %s35, %s36
    %p40 = pneg %p34
    %p41 = scmp.eq.s32.totalorder %s13, 3
    %p42 = por %p40, %p41
    %p43 = scmp.ne.s32.totalorder %s35, %s38
    %p44 = scmp.eq.s32.totalorder %s13, 0
    %p45 = por %p43, %p44
    %p46 = scmp.ne.s32.totalorder %s35, %s38
    %p47 = scmp.eq.s32.totalorder %s18, 3
    %p48 = por %p46, %p47
    %p49 = scmp.ne.s32.totalorder %s38, %s39
    %p50 = scmp.eq.s32.totalorder %s18, 0
    %p51 = por %p49, %p50
    %p52 = scmp.ne.s32.totalorder %s38, %s39
    %p53 = scmp.eq.s32.totalorder %s19, 3
    %p54 = por %p52, %p53
    %p56 = scmp.ne.s32.totalorder %s39, %s55
    %p57 = scmp.eq.s32.totalorder %s19, 0
    %p58 = por %p56, %p57
    %s60 = sadd.s32 %s59, 1
    %p63 = scmp.eq.s32.totalorder %s13, 3
    %p64 = scmp.ne.s32.totalorder %s59, %s61
    %p65 = scmp.eq.s32.totalorder %s13, 0
    %p66 = por %p64, %p65
    %p67 = scmp.ne.s32.totalorder %s59, %s61
    %p68 = scmp.eq.s32.totalorder %s18, 3
    %p69 = por %p67, %p68
    %p70 = scmp.ne.s32.totalorder %s61, %s62
    %p71 = scmp.eq.s32.totalorder %s18, 0
    %p72 = por %p70, %p71
    %p73 = scmp.ne.s32.totalorder %s61, %s62
    %p74 = scmp.eq.s32.totalorder %s19, 3
    %p75 = por %p73, %p74
    %p77 = scmp.ne.s32.totalorder %s62, %s76
    %p78 = scmp.eq.s32.totalorder %s19, 0
    %p79 = por %p77, %p78
    %s81 = sadd.s32 %s80, 1
    %p84 = scmp.eq.s32.totalorder %s13, 3
    %p85 = scmp.ne.s32.totalorder %s80, %s82
    %p86 = scmp.eq.s32.totalorder %s13, 0
    %p87 = por %p85, %p86
    %p88 = scmp.ne.s32.totalorder %s80, %s82
    %p89 = scmp.eq.s32.totalorder %s18, 3
    %p90 = por %p88, %p89
    %p91 = scmp.ne.s32.totalorder %s82, %s83
    %p92 = scmp.eq.s32.totalorder %s18, 0
    %p93 = por %p91, %p92
    %p94 = scmp.ne.s32.totalorder %s82, %s83
    %p95 = scmp.eq.s32.totalorder %s19, 3
    %p96 = por %p94, %p95
    %p98 = scmp.ne.s32.totalorder %s83, %s97
    %p99 = scmp.eq.s32.totalorder %s19, 0
    %p100 = por %p98, %p99
    %s102 = sadd.s32 %s101, 1
    %p105 = scmp.eq.s32.totalorder %s13, 3
    %p106 = scmp.ne.s32.totalorder %s101, %s103
    %p107 = scmp.eq.s32.totalorder %s13, 0
    %p108 = por %p106, %p107
    %p109 = scmp.ne.s32.totalorder %s101, %s103
    %p110 = scmp.eq.s32.totalorder %s18, 3
    %p111 = por %p109, %p110
    %p112 = scmp.ne.s32.totalorder %s103, %s104
    %p113 = scmp.eq.s32.totalorder %s18, 0
    %p114 = por %p112, %p113
    %p115 = scmp.ne.s32.totalorder %s103, %s104
    %p116 = scmp.eq.s32.totalorder %s19, 3
    %p117 = por %p115, %p116
    %p119 = scmp.ne.s32.totalorder %s104, %s118
    %p120 = scmp.eq.s32.totalorder %s19, 0
    %p121 = por %p119, %p120
    %s123 = sadd.s32 %s122, 1
    %p126 = scmp.eq.s32.totalorder %s13, 3
    %p127 = scmp.ne.s32.totalorder %s122, %s124
    %p128 = scmp.eq.s32.totalorder %s13, 0
    %p129 = por %p127, %p128
    %p130 = scmp.ne.s32.totalorder %s122, %s124
    %p131 = scmp.eq.s32.totalorder %s18, 3
    %p132 = por %p130, %p131
    %p133 = scmp.ne.s32.totalorder %s124, %s125
    %p134 = scmp.eq.s32.totalorder %s18, 0
    %p135 = por %p133, %p134
    %p136 = scmp.ne.s32.totalorder %s124, %s125
    %p137 = scmp.eq.s32.totalorder %s19, 3
    %p138 = por %p136, %p137
    %p140 = scmp.ne.s32.totalorder %s125, %s139
    %p141 = scmp.eq.s32.totalorder %s19, 0
    %p142 = por %p140, %p141
    %s144 = sadd.s32 %s143, 1
    %p147 = scmp.eq.s32.totalorder %s13, 3
    %p148 = scmp.ne.s32.totalorder %s143, %s145
    %p149 = scmp.eq.s32.totalorder %s13, 0
    %p150 = por %p148, %p149
    %p151 = scmp.ne.s32.totalorder %s143, %s145
    %p152 = scmp.eq.s32.totalorder %s18, 3
    %p153 = por %p151, %p152
    %p154 = scmp.ne.s32.totalorder %s145, %s146
    %p155 = scmp.eq.s32.totalorder %s18, 0
    %p156 = por %p154, %p155
    %p157 = scmp.ne.s32.totalorder %s145, %s146
    %p158 = scmp.eq.s32.totalorder %s19, 3
    %p159 = por %p157, %p158
    %p161 = scmp.ne.s32.totalorder %s146, %s160
    %p162 = scmp.eq.s32.totalorder %s19, 0
    %p163 = por %p161, %p162
    %s165 = sadd.s32 %s164, 1
    %p168 = scmp.eq.s32.totalorder %s13, 3
    %p169 = scmp.ne.s32.totalorder %s164, %s166
    %p170 = scmp.eq.s32.totalorder %s13, 0
    %p171 = por %p169, %p170
    %p172 = scmp.ne.s32.totalorder %s164, %s166
    %p173 = scmp.eq.s32.totalorder %s18, 3
    %p174 = por %p172, %p173
    %p175 = scmp.ne.s32.totalorder %s166, %s167
    %p176 = scmp.eq.s32.totalorder %s18, 0
    %p177 = por %p175, %p176
    %p178 = scmp.ne.s32.totalorder %s166, %s167
    %p179 = scmp.eq.s32.totalorder %s19, 3
    %p180 = por %p178, %p179
    %p182 = scmp.ne.s32.totalorder %s167, %s181
    %p183 = scmp.eq.s32.totalorder %s19, 0
    %p184 = por %p182, %p183
    %s185 = ssub.s32 %s20, %s32
    %s186 = ssub.s32 %s21, %s28
    %s187 = sor.u32 %s185, %s186
    %p188 = scmp.eq.s32.totalorder %s187, 0
    %s190 = sadd.s32 %s189, 1
    %s191 = scalar_select %p188, %s189, %s190
    %p194 = pneg %p188
    %p195 = scmp.eq.s32.totalorder %s13, 3
    %p196 = por %p194, %p195
    %p197 = scmp.ne.s32.totalorder %s189, %s192
    %p198 = scmp.eq.s32.totalorder %s13, 0
    %p199 = por %p197, %p198
    %p200 = scmp.ne.s32.totalorder %s189, %s192
    %p201 = scmp.eq.s32.totalorder %s18, 3
    %p202 = por %p200, %p201
    %p203 = scmp.ne.s32.totalorder %s192, %s193
    %p204 = scmp.eq.s32.totalorder %s18, 0
    %p205 = por %p203, %p204
    %p206 = scmp.ne.s32.totalorder %s192, %s193
    %p207 = scmp.eq.s32.totalorder %s19, 3
    %p208 = por %p206, %p207
    %p210 = scmp.ne.s32.totalorder %s193, %s209
    %p211 = scmp.eq.s32.totalorder %s19, 0
    %p212 = por %p210, %p211
    %p213 = scmp.le.s32.totalorder 1, %s13
    %p214 = scmp.lt.s32.totalorder %s13, 5
    %p215 = pnand %p213, %p214
    %p216 = pneg %p215
    // Predicated region
    $region9: #{bottleneck_forward.1} parent=5 // pred_check
      _
    $region10: #{bottleneck_forward.1} parent=5 // pred_check_branch
      %218 = sbr.rel (%p215) target = $region12
    $region11: #{bottleneck_forward.1} parent=5 // pred_region
      %s219 = ssub.s32 %s13, 1
      // Predicated region
      $region13: #{bottleneck_forward.1} parent=11 // pred_check
        %p220 = pneg %p72
      $region14: #{bottleneck_forward.1} parent=11 // pred_check_branch
        %222 = sbr.rel (%p220) target = $region16
      $region15: #{bottleneck_forward.1} parent=11 // pred_region
        _
      $region16: #{bottleneck_forward.1} parent=11 // pred_fallthru
        _
      // Predicated region
      $region17: #{bottleneck_forward.1} parent=11 // pred_check
        %p223 = pneg %p93
      $region18: #{bottleneck_forward.1} parent=11 // pred_check_branch
        %225 = sbr.rel (%p223) target = $region20
      $region19: #{bottleneck_forward.1} parent=11 // pred_region
        _
      $region20: #{bottleneck_forward.1} parent=11 // pred_fallthru
        _
      // Predicated region
      $region21: #{bottleneck_forward.1} parent=11 // pred_check
        %p226 = pneg %p114
      $region22: #{bottleneck_forward.1} parent=11 // pred_check_branch
        %228 = sbr.rel (%p226) target = $region24
      $region23: #{bottleneck_forward.1} parent=11 // pred_region
        _
      $region24: #{bottleneck_forward.1} parent=11 // pred_fallthru
        _
      // Predicated region
      $region25: #{bottleneck_forward.1} parent=11 // pred_check
        %p229 = pneg %p135
      $region26: #{bottleneck_forward.1} parent=11 // pred_check_branch
        %231 = sbr.rel (%p229) target = $region28
      $region27: #{bottleneck_forward.1} parent=11 // pred_region
        _
      $region28: #{bottleneck_forward.1} parent=11 // pred_fallthru
        _
      // Predicated region
      $region29: #{bottleneck_forward.1} parent=11 // pred_check
        %p232 = pneg %p156
      $region30: #{bottleneck_forward.1} parent=11 // pred_check_branch
        %234 = sbr.rel (%p232) target = $region32
      $region31: #{bottleneck_forward.1} parent=11 // pred_region
        _
      $region32: #{bottleneck_forward.1} parent=11 // pred_fallthru
        _
      // Predicated region
      $region33: #{bottleneck_forward.1} parent=11 // pred_check
        %p235 = pneg %p177
      $region34: #{bottleneck_forward.1} parent=11 // pred_check_branch
        %237 = sbr.rel (%p235) target = $region36
      $region35: #{bottleneck_forward.1} parent=11 // pred_region
        _
      $region36: #{bottleneck_forward.1} parent=11 // pred_fallthru
        _
    $region12: #{bottleneck_forward.1} parent=5 // pred_fallthru
      _
    %p238 = scmp.lt.s32.totalorder %s13, 4
    // Predicated region
    $region37: #{bottleneck_forward.1} parent=5 // pred_check
      %p239 = pneg %p238
    $region38: #{bottleneck_forward.1} parent=5 // pred_check_branch
      %241 = sbr.rel (%p239) target = $region40
    $region39: #{bottleneck_forward.1} parent=5 // pred_region
      // Predicated region
      $region41: #{bottleneck_forward.1} parent=39 // pred_check
        %p242 = pneg %p45
      $region42: #{bottleneck_forward.1} parent=39 // pred_check_branch
        %244 = sbr.rel (%p242) target = $region44
      $region43: #{bottleneck_forward.1} parent=39 // pred_region
        %p245 = scmp.lt.s32.totalorder %s20, 1
        %s246 = scalar_select %p245, %s20, 1
        %s247 = smul.addr %s246, 36
        %s248 = smul.addr %s247, 4
        %s249 = scalar_lea.vmem %s0, %s248
      $region44: #{bottleneck_forward.1} parent=39 // pred_fallthru
        _
    $region40: #{bottleneck_forward.1} parent=5 // pred_fallthru
      _
    %p250 = scmp.le.s32.totalorder 1, %s13
    %p251 = scmp.lt.s32.totalorder %s13, 5
    %p252 = pnand %p250, %p251
    %p253 = pneg %p252
    // Predicated region
    $region45: #{bottleneck_forward.1} parent=5 // pred_check
      _
    $region46: #{bottleneck_forward.1} parent=5 // pred_check_branch
      %255 = sbr.rel (%p252) target = $region48
    $region47: #{bottleneck_forward.1} parent=5 // pred_region
      %s256 = ssub.s32 %s13, 1
      %p257 = scmp.lt.s32.totalorder %s22, 1
      %s258 = scalar_select %p257, %s22, 1
      %s259 = smul.addr %s258, 36
      %s260 = smul.addr %s259, 4
      %s261 = scalar_lea.vmem %s0, %s260
      %p262 = pneg %p51
      %p263 = pneg %p48
      %p264 = pneg %p72
      %p265 = pneg %p69
      %p266 = pneg %p93
      %p267 = pneg %p90
      %p268 = pneg %p114
      %p269 = pneg %p111
      %p270 = pneg %p135
      %p271 = pneg %p132
      %p272 = pneg %p156
      %p273 = pneg %p153
      %p274 = pneg %p177
      %p275 = pneg %p174
      %p276 = pneg %p205
      %p277 = pneg %p202
      %s278 = smul.u32 16, %s23
      %p279 = scmp.lt.s32.totalorder %s22, 1
      %s280 = scalar_select %p279, %s22, 1
      %p281 = scmp.lt.s32.totalorder %s278, 31
      %s282 = scalar_select %p281, %s278, 31
      %s283 = smul.addr %s280, 32
      %s284 = sadd.s32 %s282, %s283
      %s285 = smul.addr %s284, 4
      %s286 = scalar_lea.vmem %s7, %s285
      %p287 = scmp.lt.s32.totalorder %s22, 1
      %s288 = scalar_select %p287, %s22, 1
      %s289 = smul.addr %s288, 36
      %s290 = smul.addr %s289, 4
      %s291 = scalar_lea.vmem %s0, %s290
      %s292 = smul.u32 16, %s23
      %p293 = scmp.lt.s32.totalorder %s22, 1
      %s294 = scalar_select %p293, %s22, 1
      %p295 = scmp.lt.s32.totalorder %s292, 31
      %s296 = scalar_select %p295, %s292, 31
      %s297 = smul.addr %s294, 32
      %s298 = sadd.s32 %s296, %s297
      %s299 = smul.addr %s298, 4
      %s300 = scalar_lea.vmem %s7, %s299
      %s301 = smul.u32 16, %s23
      %s303 = smul.u32 %s23, 128
      %s304 = sshra.s32 %s303, 3
      %s305 = sand.u32 %s303, 7
      %s306 = smul.addr %s304, 4
      %s307 = scalar_lea.vmem %s291, %s306
      %v308 = vld [vmem:[%s307] sm:$0xf]
      %v309 = vld [vmem:[%s307 + $0x4] sm:$0xf]
      %v310 = vld [vmem:[%s307 + $0x8] sm:$0xf]
      %v311 = vld [vmem:[%s307 + $0xc] sm:$0xf]
      %v312 = vld [vmem:[%s307 + $0x10] sm:$0xf]
      %v313 = vld [vmem:[%s307 + $0x14] sm:$0xf]
      %v314 = vld [vmem:[%s307 + $0x18] sm:$0xf]
      %v315 = vld [vmem:[%s307 + $0x1c] sm:$0xf]
      %v316 = vld [vmem:[%s307 + $0x20] sm:$0xf]
      %v317 = vld [vmem:[%s307 + $0x24] sm:$0xf]
      %v318 = vld [vmem:[%s307 + $0x28] sm:$0xf]
      %v319 = vld [vmem:[%s307 + $0x2c] sm:$0xf]
      %v320 = vld [vmem:[%s307 + $0x30] sm:$0xf]
      %v321 = vld [vmem:[%s307 + $0x34] sm:$0xf]
      %v322 = vld [vmem:[%s307 + $0x38] sm:$0xf]
      %v323 = vld [vmem:[%s307 + $0x3c] sm:$0xf]
      %v324 = vld [vmem:[%s307 + $0x40] sm:$0xf]
      %v325 = vld [vmem:[%s307 + $0x44] sm:$0xf]
      %v326 = vld [vmem:[%s307 + $0x48] sm:$0xf]
      %v327 = vld [vmem:[%s307 + $0x4c] sm:$0xf]
      %v328 = vld [vmem:[%s1] sm:$0xf]
      %v329 = vld [vmem:[%s1 + $0x4] sm:$0xf]
      %v330 = vld [vmem:[%s4] sm:$0x1]
      %v332 = vlaneseq
      %v333 = vshrl.u32 %v332, 7
      %v334 = vsub.s32 0, %v333
      %v335 = vrot.slane %v330, %v334
      %v357 = vunpack.c.l.b16 %v308
      %v358 = vunpack.c.l.b16 %v309
      %v359 = vunpack.c.l.b16 %v310
      %v360 = vunpack.c.l.b16 %v311
      %v361 = vunpack.c.l.b16 %v312
      %v362 = vunpack.c.l.b16 %v313
      %v363 = vunpack.c.l.b16 %v314
      %v364 = vunpack.c.l.b16 %v315
      %v365 = vunpack.c.l.b16 %v316
      %v366 = vunpack.c.l.b16 %v317
      %v367 = vunpack.c.l.b16 %v318
      %v368 = vunpack.c.l.b16 %v319
      %v369 = vunpack.c.l.b16 %v320
      %v370 = vunpack.c.l.b16 %v321
      %v371 = vunpack.c.l.b16 %v322
      %v372 = vunpack.c.l.b16 %v323
      %v373 = vunpack.c.l.b16 %v324
      %v374 = vunpack.c.l.b16 %v325
      %v375 = vunpack.c.l.b16 %v326
      %v376 = vunpack.c.l.b16 %v327
      %v377 = vpack.c.b16 %v358, %v357
      %v378 = vpack.c.b16 %v360, %v359
      %v379 = vpack.c.b16 %v362, %v361
      %v380 = vpack.c.b16 %v364, %v363
      %v381 = vpack.c.b16 %v366, %v365
      %v382 = vpack.c.b16 %v368, %v367
      %v383 = vpack.c.b16 %v370, %v369
      %v384 = vpack.c.b16 %v372, %v371
      %v385 = vpack.c.b16 %v374, %v373
      %v386 = vpack.c.b16 %v376, %v375
      %v389 = vunpack.c.l.b16 %v328
      %v390 = vunpack.c.l.b16 %v329
      %v391 = vpack.c.b16 %v390, %v389
      %vm393 = vcmask 130048
      %v395 = vsel %vm393, %v377, 0
      %v398 = vsel %vm393, %v378, 0
      %v401 = vsel %vm393, %v379, 0
      %v404 = vsel %vm393, %v380, 0
      %v407 = vsel %vm393, %v381, 0
      %v410 = vsel %vm393, %v382, 0
      %v413 = vsel %vm393, %v383, 0
      %v416 = vsel %vm393, %v384, 0
      %v419 = vsel %vm393, %v385, 0
      %v422 = vsel %vm393, %v386, 0
      %424 = vmatprep.subr.bf16.mxu0 0
      %425 = vmatpush1.bf16.msra.mxu0 0
      %426 = vmatprep.subr.bf16.mxu0 0
      %427 = vmatpush1.bf16.msra.mxu0 0
      %428 = vmatprep.subr.bf16.mxu0 0
      %429 = vmatpush1.bf16.msra.mxu0 0
      %430 = vmatprep.subr.bf16.mxu0 0
      %431 = vmatpush1.bf16.msra.mxu0 0
      %432 = vmatprep.subr.bf16.mxu0 0
      %433 = vmatpush1.bf16.msra.mxu0 0
      %434 = vmatprep.subr.bf16.mxu0 0
      %435 = vmatpush1.bf16.msra.mxu0 0
      %436 = vmatprep.subr.bf16.mxu0 0
      %437 = vmatpush1.bf16.msra.mxu0 0
      %438 = vmatprep.subr.bf16.mxu0 0
      %439 = vmatpush1.bf16.msra.mxu0 %v391
      %440 = vmatprep.subr.bf16.mxu0 0
      %441 = vmatpush2.bf16.msra.mxu0 0
      %442 = vmatprep.subr.bf16.mxu0 0
      %443 = vmatpush2.bf16.msra.mxu0 0
      %444 = vmatprep.subr.bf16.mxu0 0
      %445 = vmatpush2.bf16.msra.mxu0 0
      %446 = vmatprep.subr.bf16.mxu0 0
      %447 = vmatpush2.bf16.msra.mxu0 0
      %448 = vmatprep.subr.bf16.mxu0 0
      %449 = vmatpush2.bf16.msra.mxu0 0
      %450 = vmatprep.subr.bf16.mxu0 0
      %451 = vmatpush2.bf16.msra.mxu0 0
      %452 = vmatprep.subr.bf16.mxu0 0
      %453 = vmatpush2.bf16.msra.mxu0 0
      %454 = vmatprep.subr.bf16.mxu0 0
      %455 = vmatpush2.bf16.msra.mxu0 0
      %456 = vmatprep.mubr.bf16.mxu0 0
      %457 = vmatmul.mubr.bf16.gmra.mxu0 %v395
      %v458 = vpop.f32.mrf.mxu0
      %v459 = vadd.f32 %v335, %v458
      %v460 = vpop.f32.mrf.mxu0
      %v461 = vpop.f32.mrf.mxu0
      %v462 = vadd.f32 %v335, %v461
      %v463 = vpop.f32.mrf.mxu0
      %464 = vmatprep.mubr.bf16.mxu0 0
      %465 = vmatmul.mubr.bf16.gmra.mxu0 %v398
      %v466 = vpop.f32.mrf.mxu0
      %v467 = vadd.f32 %v335, %v466
      %v468 = vpop.f32.mrf.mxu0
      %v469 = vpop.f32.mrf.mxu0
      %v470 = vadd.f32 %v335, %v469
      %v471 = vpop.f32.mrf.mxu0
      %472 = vmatprep.mubr.bf16.mxu0 0
      %473 = vmatmul.mubr.bf16.gmra.mxu0 %v401
      %v474 = vpop.f32.mrf.mxu0
      %v475 = vadd.f32 %v335, %v474
      %v476 = vpop.f32.mrf.mxu0
      %v477 = vpop.f32.mrf.mxu0
      %v478 = vadd.f32 %v335, %v477
      %v479 = vpop.f32.mrf.mxu0
      %480 = vmatprep.mubr.bf16.mxu0 0
      %481 = vmatmul.mubr.bf16.gmra.mxu0 %v404
      %v482 = vpop.f32.mrf.mxu0
      %v483 = vadd.f32 %v335, %v482
      %v484 = vpop.f32.mrf.mxu0
      %v485 = vpop.f32.mrf.mxu0
      %v486 = vadd.f32 %v335, %v485
      %v487 = vpop.f32.mrf.mxu0
      %488 = vmatprep.mubr.bf16.mxu0 0
      %489 = vmatmul.mubr.bf16.gmra.mxu0 %v407
      %v490 = vpop.f32.mrf.mxu0
      %v491 = vadd.f32 %v335, %v490
      %v492 = vpop.f32.mrf.mxu0
      %v493 = vpop.f32.mrf.mxu0
      %v494 = vadd.f32 %v335, %v493
      %v495 = vpop.f32.mrf.mxu0
      %496 = vmatprep.mubr.bf16.mxu0 0
      %497 = vmatmul.mubr.bf16.gmra.mxu0 %v410
      %v498 = vpop.f32.mrf.mxu0
      %v499 = vadd.f32 %v335, %v498
      %v500 = vpop.f32.mrf.mxu0
      %v501 = vpop.f32.mrf.mxu0
      %v502 = vadd.f32 %v335, %v501
      %v503 = vpop.f32.mrf.mxu0
      %504 = vmatprep.mubr.bf16.mxu0 0
      %505 = vmatmul.mubr.bf16.gmra.mxu0 %v413
      %v506 = vpop.f32.mrf.mxu0
      %v507 = vadd.f32 %v335, %v506
      %v508 = vpop.f32.mrf.mxu0
      %v509 = vpop.f32.mrf.mxu0
      %v510 = vadd.f32 %v335, %v509
      %v511 = vpop.f32.mrf.mxu0
      %512 = vmatprep.mubr.bf16.mxu0 0
      %513 = vmatmul.mubr.bf16.gmra.mxu0 %v416
      %v514 = vpop.f32.mrf.mxu0
      %v515 = vadd.f32 %v335, %v514
      %v516 = vpop.f32.mrf.mxu0
      %v517 = vpop.f32.mrf.mxu0
      %v518 = vadd.f32 %v335, %v517
      %v519 = vpop.f32.mrf.mxu0
      %520 = vmatprep.mubr.bf16.mxu0 0
      %521 = vmatmul.mubr.bf16.gmra.mxu0 %v419
      %v522 = vpop.f32.mrf.mxu0
      %v523 = vadd.f32 %v335, %v522
      %v524 = vpop.f32.mrf.mxu0
      %v525 = vpop.f32.mrf.mxu0
      %v526 = vadd.f32 %v335, %v525
      %v527 = vpop.f32.mrf.mxu0
      %528 = vmatprep.mubr.bf16.mxu0 0
      %529 = vmatmul.mubr.bf16.gmra.mxu0 %v422
      %v530 = vpop.f32.mrf.mxu0
      %v531 = vadd.f32 %v335, %v530
      %v532 = vpop.f32.mrf.mxu0
      %v533 = vpop.f32.mrf.mxu0
      %v534 = vadd.f32 %v335, %v533
      %v535 = vpop.f32.mrf.mxu0
      %536 = vdwg.mxu0
      %v537 = vmax.f32 %v459, 0.0
      %v538 = vmax.f32 %v462, 0.0
      %v539 = vmax.f32 %v467, 0.0
      %v540 = vmax.f32 %v470, 0.0
      %v541 = vmax.f32 %v475, 0.0
      %v542 = vmax.f32 %v478, 0.0
      %v543 = vmax.f32 %v483, 0.0
      %v544 = vmax.f32 %v486, 0.0
      %v545 = vmax.f32 %v491, 0.0
      %v546 = vmax.f32 %v494, 0.0
      %v547 = vmax.f32 %v499, 0.0
      %v548 = vmax.f32 %v502, 0.0
      %v549 = vmax.f32 %v507, 0.0
      %v550 = vmax.f32 %v510, 0.0
      %v551 = vmax.f32 %v515, 0.0
      %v552 = vmax.f32 %v518, 0.0
      %v553 = vmax.f32 %v523, 0.0
      %v554 = vmax.f32 %v526, 0.0
      %v555 = vmax.f32 %v531, 0.0
      %v556 = vmax.f32 %v534, 0.0
      %v557 = vlaneseq
      %v558 = vshrl.u32 %v557, 7
      %v559 = vadd.s32 %v558, 8
      %v560 = vadd.s32 %v558, 16
      %v561 = vadd.s32 %v558, 24
      %v562 = vadd.s32 %v558, 32
      %v563 = vadd.s32 %v558, 40
      %v564 = vadd.s32 %v558, 48
      %v565 = vadd.s32 %v558, 56
      %v566 = vadd.s32 %v558, 64
      %v567 = vadd.s32 %v558, 72
      %v568 = vadd.s32 %v558, 80
      %v569 = vadd.s32 %v558, 88
      %v570 = vadd.s32 %v558, 96
      %v571 = vadd.s32 %v558, 104
      %v572 = vadd.s32 %v558, 112
      %v573 = vadd.s32 %v558, 120
      %v574 = vadd.s32 %v558, 128
      %v575 = vadd.s32 %v558, 136
      %v576 = vadd.s32 %v558, 144
      %v577 = vadd.s32 %v558, 152
      %v578 = vstv %s303
      %v579 = vadd.s32 %v558, %v578
      %v580 = vadd.s32 %v559, %v578
      %v581 = vadd.s32 %v560, %v578
      %v582 = vadd.s32 %v561, %v578
      %v583 = vadd.s32 %v562, %v578
      %v584 = vadd.s32 %v563, %v578
      %v585 = vadd.s32 %v564, %v578
      %v586 = vadd.s32 %v565, %v578
      %v587 = vadd.s32 %v566, %v578
      %v588 = vadd.s32 %v567, %v578
      %v589 = vadd.s32 %v568, %v578
      %v590 = vadd.s32 %v569, %v578
      %v591 = vadd.s32 %v570, %v578
      %v592 = vadd.s32 %v571, %v578
      %v593 = vadd.s32 %v572, %v578
      %v594 = vadd.s32 %v573, %v578
      %v595 = vadd.s32 %v574, %v578
      %v596 = vadd.s32 %v575, %v578
      %v597 = vadd.s32 %v576, %v578
      %v598 = vadd.s32 %v577, %v578
      %vm599 = vcmp.ge.s32.totalorder %v579, 16
      %vm600 = vcmp.ge.s32.totalorder %v580, 16
      %vm601 = vcmp.ge.s32.totalorder %v581, 16
      %vm602 = vcmp.ge.s32.totalorder %v582, 16
      %vm603 = vcmp.ge.s32.totalorder %v583, 16
      %vm604 = vcmp.ge.s32.totalorder %v584, 16
      %vm605 = vcmp.ge.s32.totalorder %v585, 16
      %vm606 = vcmp.ge.s32.totalorder %v586, 16
      %vm607 = vcmp.ge.s32.totalorder %v587, 16
      %vm608 = vcmp.ge.s32.totalorder %v588, 16
      %vm609 = vcmp.ge.s32.totalorder %v589, 16
      %vm610 = vcmp.ge.s32.totalorder %v590, 16
      %vm611 = vcmp.ge.s32.totalorder %v591, 16
      %vm612 = vcmp.ge.s32.totalorder %v592, 16
      %vm613 = vcmp.ge.s32.totalorder %v593, 16
      %vm614 = vcmp.ge.s32.totalorder %v594, 16
      %vm615 = vcmp.ge.s32.totalorder %v595, 16
      %vm616 = vcmp.ge.s32.totalorder %v596, 16
      %vm617 = vcmp.ge.s32.totalorder %v597, 16
      %vm618 = vcmp.ge.s32.totalorder %v598, 16
      %vm619 = vcmp.lt.s32.totalorder %v579, 272
      %vm620 = vcmp.lt.s32.totalorder %v580, 272
      %vm621 = vcmp.lt.s32.totalorder %v581, 272
      %vm622 = vcmp.lt.s32.totalorder %v582, 272
      %vm623 = vcmp.lt.s32.totalorder %v583, 272
      %vm624 = vcmp.lt.s32.totalorder %v584, 272
      %vm625 = vcmp.lt.s32.totalorder %v585, 272
      %vm626 = vcmp.lt.s32.totalorder %v586, 272
      %vm627 = vcmp.lt.s32.totalorder %v587, 272
      %vm628 = vcmp.lt.s32.totalorder %v588, 272
      %vm629 = vcmp.lt.s32.totalorder %v589, 272
      %vm630 = vcmp.lt.s32.totalorder %v590, 272
      %vm631 = vcmp.lt.s32.totalorder %v591, 272
      %vm632 = vcmp.lt.s32.totalorder %v592, 272
      %vm633 = vcmp.lt.s32.totalorder %v593, 272
      %vm634 = vcmp.lt.s32.totalorder %v594, 272
      %vm635 = vcmp.lt.s32.totalorder %v595, 272
      %vm636 = vcmp.lt.s32.totalorder %v596, 272
      %vm637 = vcmp.lt.s32.totalorder %v597, 272
      %vm638 = vcmp.lt.s32.totalorder %v598, 272
      %vm639 = vmand %vm599, %vm619
      %vm640 = vmand %vm600, %vm620
      %vm641 = vmand %vm601, %vm621
      %vm642 = vmand %vm602, %vm622
      %vm643 = vmand %vm603, %vm623
      %vm644 = vmand %vm604, %vm624
      %vm645 = vmand %vm605, %vm625
      %vm646 = vmand %vm606, %vm626
      %vm647 = vmand %vm607, %vm627
      %vm648 = vmand %vm608, %vm628
      %vm649 = vmand %vm609, %vm629
      %vm650 = vmand %vm610, %vm630
      %vm651 = vmand %vm611, %vm631
      %vm652 = vmand %vm612, %vm632
      %vm653 = vmand %vm613, %vm633
      %vm654 = vmand %vm614, %vm634
      %vm655 = vmand %vm615, %vm635
      %vm656 = vmand %vm616, %vm636
      %vm657 = vmand %vm617, %vm637
      %vm658 = vmand %vm618, %vm638
      %v659 = vsel %vm639, 1, 0
      %v660 = vsel %vm640, 1, 0
      %v661 = vsel %vm641, 1, 0
      %v662 = vsel %vm642, 1, 0
      %v663 = vsel %vm643, 1, 0
      %v664 = vsel %vm644, 1, 0
      %v665 = vsel %vm645, 1, 0
      %v666 = vsel %vm646, 1, 0
      %v667 = vsel %vm647, 1, 0
      %v668 = vsel %vm648, 1, 0
      %v669 = vsel %vm649, 1, 0
      %v670 = vsel %vm650, 1, 0
      %v671 = vsel %vm651, 1, 0
      %v672 = vsel %vm652, 1, 0
      %v673 = vsel %vm653, 1, 0
      %v674 = vsel %vm654, 1, 0
      %v675 = vsel %vm655, 1, 0
      %v676 = vsel %vm656, 1, 0
      %v677 = vsel %vm657, 1, 0
      %v678 = vsel %vm658, 1, 0
      %vm679 = vcmp.eq.s32.totalorder %v659, 1
      %vm680 = vcmp.eq.s32.totalorder %v660, 1
      %vm681 = vcmp.eq.s32.totalorder %v661, 1
      %vm682 = vcmp.eq.s32.totalorder %v662, 1
      %vm683 = vcmp.eq.s32.totalorder %v663, 1
      %vm684 = vcmp.eq.s32.totalorder %v664, 1
      %vm685 = vcmp.eq.s32.totalorder %v665, 1
      %vm686 = vcmp.eq.s32.totalorder %v666, 1
      %vm687 = vcmp.eq.s32.totalorder %v667, 1
      %vm688 = vcmp.eq.s32.totalorder %v668, 1
      %vm689 = vcmp.eq.s32.totalorder %v669, 1
      %vm690 = vcmp.eq.s32.totalorder %v670, 1
      %vm691 = vcmp.eq.s32.totalorder %v671, 1
      %vm692 = vcmp.eq.s32.totalorder %v672, 1
      %vm693 = vcmp.eq.s32.totalorder %v673, 1
      %vm694 = vcmp.eq.s32.totalorder %v674, 1
      %vm695 = vcmp.eq.s32.totalorder %v675, 1
      %vm696 = vcmp.eq.s32.totalorder %v676, 1
      %vm697 = vcmp.eq.s32.totalorder %v677, 1
      %vm698 = vcmp.eq.s32.totalorder %v678, 1
      %v699 = vsel %vm679, %v537, 0.0
      %v700 = vsel %vm680, %v538, 0.0
      %v701 = vsel %vm681, %v539, 0.0
      %v702 = vsel %vm682, %v540, 0.0
      %v703 = vsel %vm683, %v541, 0.0
      %v704 = vsel %vm684, %v542, 0.0
      %v705 = vsel %vm685, %v543, 0.0
      %v706 = vsel %vm686, %v544, 0.0
      %v707 = vsel %vm687, %v545, 0.0
      %v708 = vsel %vm688, %v546, 0.0
      %v709 = vsel %vm689, %v547, 0.0
      %v710 = vsel %vm690, %v548, 0.0
      %v711 = vsel %vm691, %v549, 0.0
      %v712 = vsel %vm692, %v550, 0.0
      %v713 = vsel %vm693, %v551, 0.0
      %v714 = vsel %vm694, %v552, 0.0
      %v715 = vsel %vm695, %v553, 0.0
      %v716 = vsel %vm696, %v554, 0.0
      %v717 = vsel %vm697, %v555, 0.0
      %v718 = vsel %vm698, %v556, 0.0
      %v719 = vpack.c.bf16 %v700, %v699
      %v720 = vpack.c.bf16 %v702, %v701
      %v721 = vpack.c.bf16 %v704, %v703
      %v722 = vpack.c.bf16 %v706, %v705
      %v723 = vpack.c.bf16 %v708, %v707
      %v724 = vpack.c.bf16 %v710, %v709
      %v725 = vpack.c.bf16 %v712, %v711
      %v726 = vpack.c.bf16 %v714, %v713
      %v727 = vpack.c.bf16 %v716, %v715
      %v728 = vpack.c.bf16 %v718, %v717
      %v729 = vld [vmem:[%s2] sm:$0xff]
      %v730 = vld [vmem:[%s2 + $0x8] sm:$0xff]
      %v731 = vld [vmem:[%s2 + $0x10] sm:$0xff]
      %v732 = vld [vmem:[%s2 + $0x18] sm:$0xff]
      %v733 = vld [vmem:[%s2 + $0x20] sm:$0xf]
      %v734 = vld [vmem:[%s2 + $0x24] sm:$0xff]
      %v735 = vld [vmem:[%s2 + $0x2c] sm:$0xff]
      %v736 = vld [vmem:[%s2 + $0x34] sm:$0xff]
      %v737 = vld [vmem:[%s2 + $0x3c] sm:$0xff]
      %v738 = vld [vmem:[%s2 + $0x44] sm:$0xf]
      %v739 = vld [vmem:[%s2 + $0x48] sm:$0xff]
      %v740 = vld [vmem:[%s2 + $0x50] sm:$0xff]
      %v741 = vld [vmem:[%s2 + $0x58] sm:$0xff]
      %v742 = vld [vmem:[%s2 + $0x60] sm:$0xff]
      %v743 = vld [vmem:[%s2 + $0x68] sm:$0xf]
      %v744 = vld [vmem:[%s2 + $0x6c] sm:$0xff]
      %v745 = vld [vmem:[%s2 + $0x74] sm:$0xff]
      %v746 = vld [vmem:[%s2 + $0x7c] sm:$0xff]
      %v747 = vld [vmem:[%s2 + $0x84] sm:$0xff]
      %v748 = vld [vmem:[%s2 + $0x8c] sm:$0xf]
      %v749 = vld [vmem:[%s2 + $0x90] sm:$0xff]
      %v750 = vld [vmem:[%s2 + $0x98] sm:$0xff]
      %v751 = vld [vmem:[%s2 + $0xa0] sm:$0xff]
      %v752 = vld [vmem:[%s2 + $0xa8] sm:$0xff]
      %v753 = vld [vmem:[%s2 + $0xb0] sm:$0xf]
      %v754 = vld [vmem:[%s2 + $0xb4] sm:$0xff]
      %v755 = vld [vmem:[%s2 + $0xbc] sm:$0xff]
      %v756 = vld [vmem:[%s2 + $0xc4] sm:$0xff]
      %v757 = vld [vmem:[%s2 + $0xcc] sm:$0xff]
      %v758 = vld [vmem:[%s2 + $0xd4] sm:$0xf]
      %v759 = vld [vmem:[%s2 + $0xd8] sm:$0xff]
      %v760 = vld [vmem:[%s2 + $0xe0] sm:$0xff]
      %v761 = vld [vmem:[%s2 + $0xe8] sm:$0xff]
      %v762 = vld [vmem:[%s2 + $0xf0] sm:$0xff]
      %v763 = vld [vmem:[%s2 + $0xf8] sm:$0xf]
      %v764 = vld [vmem:[%s2 + $0xfc] sm:$0xff]
      %v765 = vld [vmem:[%s2 + $0x104] sm:$0xff]
      %v766 = vld [vmem:[%s2 + $0x10c] sm:$0xff]
      %v767 = vld [vmem:[%s2 + $0x114] sm:$0xff]
      %v768 = vld [vmem:[%s2 + $0x11c] sm:$0xf]
      %v769 = vld [vmem:[%s2 + $0x120] sm:$0xff]
      %v770 = vld [vmem:[%s2 + $0x128] sm:$0xff]
      %v771 = vld [vmem:[%s2 + $0x130] sm:$0xff]
      %v772 = vld [vmem:[%s2 + $0x138] sm:$0xff]
      %v773 = vld [vmem:[%s2 + $0x140] sm:$0xf]
      %v774 = vld [vmem:[%s2 + $0x144] sm:$0xff]
      %v775 = vld [vmem:[%s2 + $0x14c] sm:$0xff]
      %v776 = vld [vmem:[%s2 + $0x154] sm:$0xff]
      %v777 = vld [vmem:[%s2 + $0x15c] sm:$0xff]
      %v778 = vld [vmem:[%s2 + $0x164] sm:$0xf]
      %v779 = vld [vmem:[%s2 + $0x168] sm:$0xff]
      %v780 = vld [vmem:[%s2 + $0x170] sm:$0xff]
      %v781 = vld [vmem:[%s2 + $0x178] sm:$0xff]
      %v782 = vld [vmem:[%s2 + $0x180] sm:$0xff]
      %v783 = vld [vmem:[%s2 + $0x188] sm:$0xf]
      %v784 = vld [vmem:[%s2 + $0x18c] sm:$0xff]
      %v785 = vld [vmem:[%s2 + $0x194] sm:$0xff]
      %v786 = vld [vmem:[%s2 + $0x19c] sm:$0xff]
      %v787 = vld [vmem:[%s2 + $0x1a4] sm:$0xff]
      %v788 = vld [vmem:[%s2 + $0x1ac] sm:$0xf]
      %v789 = vld [vmem:[%s2 + $0x1b0] sm:$0xff]
      %v790 = vld [vmem:[%s2 + $0x1b8] sm:$0xff]
      %v791 = vld [vmem:[%s2 + $0x1c0] sm:$0xff]
      %v792 = vld [vmem:[%s2 + $0x1c8] sm:$0xff]
      %v793 = vld [vmem:[%s2 + $0x1d0] sm:$0xf]
      %v794 = vld [vmem:[%s2 + $0x1d4] sm:$0xff]
      %v795 = vld [vmem:[%s2 + $0x1dc] sm:$0xff]
      %v796 = vld [vmem:[%s2 + $0x1e4] sm:$0xff]
      %v797 = vld [vmem:[%s2 + $0x1ec] sm:$0xff]
      %v798 = vld [vmem:[%s2 + $0x1f4] sm:$0xf]
      %v799 = vld [vmem:[%s2 + $0x1f8] sm:$0xff]
      %v800 = vld [vmem:[%s2 + $0x200] sm:$0xff]
      %v801 = vld [vmem:[%s2 + $0x208] sm:$0xff]
      %v802 = vld [vmem:[%s2 + $0x210] sm:$0xff]
      %v803 = vld [vmem:[%s2 + $0x218] sm:$0xf]
      %v804 = vld [vmem:[%s2 + $0x21c] sm:$0xff]
      %v805 = vld [vmem:[%s2 + $0x224] sm:$0xff]
      %v806 = vld [vmem:[%s2 + $0x22c] sm:$0xff]
      %v807 = vld [vmem:[%s2 + $0x234] sm:$0xff]
      %v808 = vld [vmem:[%s2 + $0x23c] sm:$0xf]
      %v889 = vunpack.c.l.b16 %v729
      %v890 = vunpack.c.h.b16 %v729
      %v891 = vunpack.c.l.b16 %v730
      %v892 = vunpack.c.h.b16 %v730
      %v893 = vunpack.c.l.b16 %v731
      %v894 = vunpack.c.h.b16 %v731
      %v895 = vunpack.c.l.b16 %v732
      %v896 = vunpack.c.h.b16 %v732
      %v897 = vunpack.c.l.b16 %v733
      %v898 = vunpack.c.l.b16 %v734
      %v899 = vunpack.c.h.b16 %v734
      %v900 = vunpack.c.l.b16 %v735
      %v901 = vunpack.c.h.b16 %v735
      %v902 = vunpack.c.l.b16 %v736
      %v903 = vunpack.c.h.b16 %v736
      %v904 = vunpack.c.l.b16 %v737
      %v905 = vunpack.c.h.b16 %v737
      %v906 = vunpack.c.l.b16 %v738
      %v907 = vunpack.c.l.b16 %v739
      %v908 = vunpack.c.h.b16 %v739
      %v909 = vunpack.c.l.b16 %v740
      %v910 = vunpack.c.h.b16 %v740
      %v911 = vunpack.c.l.b16 %v741
      %v912 = vunpack.c.h.b16 %v741
      %v913 = vunpack.c.l.b16 %v742
      %v914 = vunpack.c.h.b16 %v742
      %v915 = vunpack.c.l.b16 %v743
      %v916 = vunpack.c.l.b16 %v744
      %v917 = vunpack.c.h.b16 %v744
      %v918 = vunpack.c.l.b16 %v745
      %v919 = vunpack.c.h.b16 %v745
      %v920 = vunpack.c.l.b16 %v746
      %v921 = vunpack.c.h.b16 %v746
      %v922 = vunpack.c.l.b16 %v747
      %v923 = vunpack.c.h.b16 %v747
      %v924 = vunpack.c.l.b16 %v748
      %v925 = vunpack.c.l.b16 %v749
      %v926 = vunpack.c.h.b16 %v749
      %v927 = vunpack.c.l.b16 %v750
      %v928 = vunpack.c.h.b16 %v750
      %v929 = vunpack.c.l.b16 %v751
      %v930 = vunpack.c.h.b16 %v751
      %v931 = vunpack.c.l.b16 %v752
      %v932 = vunpack.c.h.b16 %v752
      %v933 = vunpack.c.l.b16 %v753
      %v934 = vunpack.c.l.b16 %v754
      %v935 = vunpack.c.h.b16 %v754
      %v936 = vunpack.c.l.b16 %v755
      %v937 = vunpack.c.h.b16 %v755
      %v938 = vunpack.c.l.b16 %v756
      %v939 = vunpack.c.h.b16 %v756
      %v940 = vunpack.c.l.b16 %v757
      %v941 = vunpack.c.h.b16 %v757
      %v942 = vunpack.c.l.b16 %v758
      %v943 = vunpack.c.l.b16 %v759
      %v944 = vunpack.c.h.b16 %v759
      %v945 = vunpack.c.l.b16 %v760
      %v946 = vunpack.c.h.b16 %v760
      %v947 = vunpack.c.l.b16 %v761
      %v948 = vunpack.c.h.b16 %v761
      %v949 = vunpack.c.l.b16 %v762
      %v950 = vunpack.c.h.b16 %v762
      %v951 = vunpack.c.l.b16 %v763
      %v952 = vunpack.c.l.b16 %v764
      %v953 = vunpack.c.h.b16 %v764
      %v954 = vunpack.c.l.b16 %v765
      %v955 = vunpack.c.h.b16 %v765
      %v956 = vunpack.c.l.b16 %v766
      %v957 = vunpack.c.h.b16 %v766
      %v958 = vunpack.c.l.b16 %v767
      %v959 = vunpack.c.h.b16 %v767
      %v960 = vunpack.c.l.b16 %v768
      %v961 = vunpack.c.l.b16 %v769
      %v962 = vunpack.c.h.b16 %v769
      %v963 = vunpack.c.l.b16 %v770
      %v964 = vunpack.c.h.b16 %v770
      %v965 = vunpack.c.l.b16 %v771
      %v966 = vunpack.c.h.b16 %v771
      %v967 = vunpack.c.l.b16 %v772
      %v968 = vunpack.c.h.b16 %v772
      %v969 = vunpack.c.l.b16 %v773
      %v970 = vunpack.c.l.b16 %v774
      %v971 = vunpack.c.h.b16 %v774
      %v972 = vunpack.c.l.b16 %v775
      %v973 = vunpack.c.h.b16 %v775
      %v974 = vunpack.c.l.b16 %v776
      %v975 = vunpack.c.h.b16 %v776
      %v976 = vunpack.c.l.b16 %v777
      %v977 = vunpack.c.h.b16 %v777
      %v978 = vunpack.c.l.b16 %v778
      %v979 = vunpack.c.l.b16 %v779
      %v980 = vunpack.c.h.b16 %v779
      %v981 = vunpack.c.l.b16 %v780
      %v982 = vunpack.c.h.b16 %v780
      %v983 = vunpack.c.l.b16 %v781
      %v984 = vunpack.c.h.b16 %v781
      %v985 = vunpack.c.l.b16 %v782
      %v986 = vunpack.c.h.b16 %v782
      %v987 = vunpack.c.l.b16 %v783
      %v988 = vunpack.c.l.b16 %v784
      %v989 = vunpack.c.h.b16 %v784
      %v990 = vunpack.c.l.b16 %v785
      %v991 = vunpack.c.h.b16 %v785
      %v992 = vunpack.c.l.b16 %v786
      %v993 = vunpack.c.h.b16 %v786
      %v994 = vunpack.c.l.b16 %v787
      %v995 = vunpack.c.h.b16 %v787
      %v996 = vunpack.c.l.b16 %v788
      %v997 = vunpack.c.l.b16 %v789
      %v998 = vunpack.c.h.b16 %v789
      %v999 = vunpack.c.l.b16 %v790
      %v1000 = vunpack.c.h.b16 %v790
      %v1001 = vunpack.c.l.b16 %v791
      %v1002 = vunpack.c.h.b16 %v791
      %v1003 = vunpack.c.l.b16 %v792
      %v1004 = vunpack.c.h.b16 %v792
      %v1005 = vunpack.c.l.b16 %v793
      %v1006 = vunpack.c.l.b16 %v794
      %v1007 = vunpack.c.h.b16 %v794
      %v1008 = vunpack.c.l.b16 %v795
      %v1009 = vunpack.c.h.b16 %v795
      %v1010 = vunpack.c.l.b16 %v796
      %v1011 = vunpack.c.h.b16 %v796
      %v1012 = vunpack.c.l.b16 %v797
      %v1013 = vunpack.c.h.b16 %v797
      %v1014 = vunpack.c.l.b16 %v798
      %v1015 = vunpack.c.l.b16 %v799
      %v1016 = vunpack.c.h.b16 %v799
      %v1017 = vunpack.c.l.b16 %v800
      %v1018 = vunpack.c.h.b16 %v800
      %v1019 = vunpack.c.l.b16 %v801
      %v1020 = vunpack.c.h.b16 %v801
      %v1021 = vunpack.c.l.b16 %v802
      %v1022 = vunpack.c.h.b16 %v802
      %v1023 = vunpack.c.l.b16 %v803
      %v1024 = vunpack.c.l.b16 %v804
      %v1025 = vunpack.c.h.b16 %v804
      %v1026 = vunpack.c.l.b16 %v805
      %v1027 = vunpack.c.h.b16 %v805
      %v1028 = vunpack.c.l.b16 %v806
      %v1029 = vunpack.c.h.b16 %v806
      %v1030 = vunpack.c.l.b16 %v807
      %v1031 = vunpack.c.h.b16 %v807
      %v1032 = vunpack.c.l.b16 %v808
      %v1033 = vpack.c.b16 %v898, %v889
      %v1034 = vpack.c.b16 %v899, %v890
      %v1035 = vpack.c.b16 %v900, %v891
      %v1036 = vpack.c.b16 %v901, %v892
      %v1037 = vpack.c.b16 %v902, %v893
      %v1038 = vpack.c.b16 %v903, %v894
      %v1039 = vpack.c.b16 %v904, %v895
      %v1040 = vpack.c.b16 %v905, %v896
      %v1041 = vpack.c.b16 %v906, %v897
      %v1042 = vpack.c.b16 %v916, %v907
      %v1043 = vpack.c.b16 %v917, %v908
      %v1044 = vpack.c.b16 %v918, %v909
      %v1045 = vpack.c.b16 %v919, %v910
      %v1046 = vpack.c.b16 %v920, %v911
      %v1047 = vpack.c.b16 %v921, %v912
      %v1048 = vpack.c.b16 %v922, %v913
      %v1049 = vpack.c.b16 %v923, %v914
      %v1050 = vpack.c.b16 %v924, %v915
      %v1051 = vpack.c.b16 %v934, %v925
      %v1052 = vpack.c.b16 %v935, %v926
      %v1053 = vpack.c.b16 %v936, %v927
      %v1054 = vpack.c.b16 %v937, %v928
      %v1055 = vpack.c.b16 %v938, %v929
      %v1056 = vpack.c.b16 %v939, %v930
      %v1057 = vpack.c.b16 %v940, %v931
      %v1058 = vpack.c.b16 %v941, %v932
      %v1059 = vpack.c.b16 %v942, %v933
      %v1060 = vpack.c.b16 %v952, %v943
      %v1061 = vpack.c.b16 %v953, %v944
      %v1062 = vpack.c.b16 %v954, %v945
      %v1063 = vpack.c.b16 %v955, %v946
      %v1064 = vpack.c.b16 %v956, %v947
      %v1065 = vpack.c.b16 %v957, %v948
      %v1066 = vpack.c.b16 %v958, %v949
      %v1067 = vpack.c.b16 %v959, %v950
      %v1068 = vpack.c.b16 %v960, %v951
      %v1069 = vpack.c.b16 %v970, %v961
      %v1070 = vpack.c.b16 %v971, %v962
      %v1071 = vpack.c.b16 %v972, %v963
      %v1072 = vpack.c.b16 %v973, %v964
      %v1073 = vpack.c.b16 %v974, %v965
      %v1074 = vpack.c.b16 %v975, %v966
      %v1075 = vpack.c.b16 %v976, %v967
      %v1076 = vpack.c.b16 %v977, %v968
      %v1077 = vpack.c.b16 %v978, %v969
      %v1078 = vpack.c.b16 %v988, %v979
      %v1079 = vpack.c.b16 %v989, %v980
      %v1080 = vpack.c.b16 %v990, %v981
      %v1081 = vpack.c.b16 %v991, %v982
      %v1082 = vpack.c.b16 %v992, %v983
      %v1083 = vpack.c.b16 %v993, %v984
      %v1084 = vpack.c.b16 %v994, %v985
      %v1085 = vpack.c.b16 %v995, %v986
      %v1086 = vpack.c.b16 %v996, %v987
      %v1087 = vpack.c.b16 %v1006, %v997
      %v1088 = vpack.c.b16 %v1007, %v998
      %v1089 = vpack.c.b16 %v1008, %v999
      %v1090 = vpack.c.b16 %v1009, %v1000
      %v1091 = vpack.c.b16 %v1010, %v1001
      %v1092 = vpack.c.b16 %v1011, %v1002
      %v1093 = vpack.c.b16 %v1012, %v1003
      %v1094 = vpack.c.b16 %v1013, %v1004
      %v1095 = vpack.c.b16 %v1014, %v1005
      %v1096 = vpack.c.b16 %v1024, %v1015
      %v1097 = vpack.c.b16 %v1025, %v1016
      %v1098 = vpack.c.b16 %v1026, %v1017
      %v1099 = vpack.c.b16 %v1027, %v1018
      %v1100 = vpack.c.b16 %v1028, %v1019
      %v1101 = vpack.c.b16 %v1029, %v1020
      %v1102 = vpack.c.b16 %v1030, %v1021
      %v1103 = vpack.c.b16 %v1031, %v1022
      %v1104 = vpack.c.b16 %v1032, %v1023
      %1177 = vmatprep.subr.bf16.mxu0 %v1097
      %1178 = vmatpush1.bf16.msra.mxu0 %v1096
      %1179 = vmatprep.subr.bf16.mxu0 %v1088
      %1180 = vmatpush1.bf16.msra.mxu0 %v1087
      %1181 = vmatprep.subr.bf16.mxu0 %v1079
      %1182 = vmatpush1.bf16.msra.mxu0 %v1078
      %1183 = vmatprep.subr.bf16.mxu0 %v1070
      %1184 = vmatpush1.bf16.msra.mxu0 %v1069
      %1185 = vmatprep.subr.bf16.mxu0 %v1061
      %1186 = vmatpush1.bf16.msra.mxu0 %v1060
      %1187 = vmatprep.subr.bf16.mxu0 %v1052
      %1188 = vmatpush1.bf16.msra.mxu0 %v1051
      %1189 = vmatprep.subr.bf16.mxu0 %v1043
      %1190 = vmatpush1.bf16.msra.mxu0 %v1042
      %1191 = vmatprep.subr.bf16.mxu0 %v1034
      %1192 = vmatpush1.bf16.msra.mxu0 %v1033
      %1193 = vmatprep.subr.bf16.mxu0 0
      %1194 = vmatpush2.bf16.msra.mxu0 0
      %1195 = vmatprep.subr.bf16.mxu0 0
      %1196 = vmatpush2.bf16.msra.mxu0 0
      %1197 = vmatprep.subr.bf16.mxu0 0
      %1198 = vmatpush2.bf16.msra.mxu0 0
      %1199 = vmatprep.subr.bf16.mxu0 0
      %1200 = vmatpush2.bf16.msra.mxu0 0
      %1201 = vmatprep.subr.bf16.mxu0 0
      %1202 = vmatpush2.bf16.msra.mxu0 0
      %1203 = vmatprep.subr.bf16.mxu0 0
      %1204 = vmatpush2.bf16.msra.mxu0 0
      %1205 = vmatprep.subr.bf16.mxu0 0
      %1206 = vmatpush2.bf16.msra.mxu0 0
      %1207 = vmatprep.subr.bf16.mxu0 0
      %1208 = vmatpush2.bf16.msra.mxu0 0
      %1209 = vmatprep.mubr.bf16.mxu0 0
      %1210 = vmatmul.mubr.bf16.gmra.mxu0 %v719
      %v1211 = vpop.f32.mrf.mxu0
      %v1212 = vadd.f32 0.0, %v1211
      %v1213 = vpop.f32.mrf.mxu0
      %v1214 = vadd.f32 0.0, %v1213
      %v1215 = vpop.f32.mrf.mxu0
      %v1216 = vadd.f32 0.0, %v1215
      %v1217 = vpop.f32.mrf.mxu0
      %v1218 = vadd.f32 0.0, %v1217
      %1219 = vmatprep.mubr.bf16.mxu0 0
      %1220 = vmatmul.mubr.bf16.gmra.mxu0 %v720
      %v1221 = vpop.f32.mrf.mxu0
      %v1222 = vadd.f32 0.0, %v1221
      %v1223 = vpop.f32.mrf.mxu0
      %v1224 = vadd.f32 0.0, %v1223
      %v1225 = vpop.f32.mrf.mxu0
      %v1226 = vadd.f32 0.0, %v1225
      %v1227 = vpop.f32.mrf.mxu0
      %v1228 = vadd.f32 0.0, %v1227
      %1229 = vmatprep.mubr.bf16.mxu0 0
      %1230 = vmatmul.mubr.bf16.gmra.mxu0 %v721
      %v1231 = vpop.f32.mrf.mxu0
      %v1232 = vadd.f32 0.0, %v1231
      %v1233 = vpop.f32.mrf.mxu0
      %v1234 = vadd.f32 0.0, %v1233
      %v1235 = vpop.f32.mrf.mxu0
      %v1236 = vadd.f32 0.0, %v1235
      %v1237 = vpop.f32.mrf.mxu0
      %v1238 = vadd.f32 0.0, %v1237
      %1239 = vmatprep.mubr.bf16.mxu0 0
      %1240 = vmatmul.mubr.bf16.gmra.mxu0 %v722
      %v1241 = vpop.f32.mrf.mxu0
      %v1242 = vadd.f32 0.0, %v1241
      %v1243 = vpop.f32.mrf.mxu0
      %v1244 = vadd.f32 0.0, %v1243
      %v1245 = vpop.f32.mrf.mxu0
      %v1246 = vadd.f32 0.0, %v1245
      %v1247 = vpop.f32.mrf.mxu0
      %v1248 = vadd.f32 0.0, %v1247
      %1249 = vmatprep.mubr.bf16.mxu0 0
      %1250 = vmatmul.mubr.bf16.gmra.mxu0 %v723
      %v1251 = vpop.f32.mrf.mxu0
      %v1252 = vadd.f32 0.0, %v1251
      %v1253 = vpop.f32.mrf.mxu0
      %v1254 = vadd.f32 0.0, %v1253
      %v1255 = vpop.f32.mrf.mxu0
      %v1256 = vadd.f32 0.0, %v1255
      %v1257 = vpop.f32.mrf.mxu0
      %v1258 = vadd.f32 0.0, %v1257
      %1259 = vmatprep.mubr.bf16.mxu0 0
      %1260 = vmatmul.mubr.bf16.gmra.mxu0 %v724
      %v1261 = vpop.f32.mrf.mxu0
      %v1262 = vadd.f32 0.0, %v1261
      %v1263 = vpop.f32.mrf.mxu0
      %v1264 = vadd.f32 0.0, %v1263
      %v1265 = vpop.f32.mrf.mxu0
      %v1266 = vadd.f32 0.0, %v1265
      %v1267 = vpop.f32.mrf.mxu0
      %v1268 = vadd.f32 0.0, %v1267
      %1269 = vmatprep.mubr.bf16.mxu0 0
      %1270 = vmatmul.mubr.bf16.gmra.mxu0 %v725
      %v1271 = vpop.f32.mrf.mxu0
      %v1272 = vadd.f32 0.0, %v1271
      %v1273 = vpop.f32.mrf.mxu0
      %v1274 = vadd.f32 0.0, %v1273
      %v1275 = vpop.f32.mrf.mxu0
      %v1276 = vadd.f32 0.0, %v1275
      %v1277 = vpop.f32.mrf.mxu0
      %v1278 = vadd.f32 0.0, %v1277
      %1279 = vmatprep.mubr.bf16.mxu0 0
      %1280 = vmatmul.mubr.bf16.gmra.mxu0 %v726
      %v1281 = vpop.f32.mrf.mxu0
      %v1282 = vadd.f32 0.0, %v1281
      %v1283 = vpop.f32.mrf.mxu0
      %v1284 = vadd.f32 0.0, %v1283
      %v1285 = vpop.f32.mrf.mxu0
      %v1286 = vadd.f32 0.0, %v1285
      %v1287 = vpop.f32.mrf.mxu0
      %v1288 = vadd.f32 0.0, %v1287
      %1289 = vmatprep.mubr.bf16.mxu0 0
      %1290 = vmatmul.mubr.bf16.gmra.mxu0 %v727
      %v1291 = vpop.f32.mrf.mxu0
      %v1292 = vpop.f32.mrf.mxu0
      %v1293 = vpop.f32.mrf.mxu0
      %v1294 = vpop.f32.mrf.mxu0
      %1295 = vmatprep.mubr.bf16.mxu0 0
      %1296 = vmatmul.mubr.bf16.gmra.mxu0 %v728
      %v1297 = vpop.f32.mrf.mxu0
      %v1298 = vpop.f32.mrf.mxu0
      %v1299 = vpop.f32.mrf.mxu0
      %v1300 = vadd.f32 0.0, %v1299
      %v1301 = vpop.f32.mrf.mxu0
      %1302 = vdwg.mxu0
      %1303 = vmatprep.subr.bf16.mxu0 %v1099
      %1304 = vmatpush1.bf16.msra.mxu0 %v1098
      %1305 = vmatprep.subr.bf16.mxu0 %v1090
      %1306 = vmatpush1.bf16.msra.mxu0 %v1089
      %1307 = vmatprep.subr.bf16.mxu0 %v1081
      %1308 = vmatpush1.bf16.msra.mxu0 %v1080
      %1309 = vmatprep.subr.bf16.mxu0 %v1072
      %1310 = vmatpush1.bf16.msra.mxu0 %v1071
      %1311 = vmatprep.subr.bf16.mxu0 %v1063
      %1312 = vmatpush1.bf16.msra.mxu0 %v1062
      %1313 = vmatprep.subr.bf16.mxu0 %v1054
      %1314 = vmatpush1.bf16.msra.mxu0 %v1053
      %1315 = vmatprep.subr.bf16.mxu0 %v1045
      %1316 = vmatpush1.bf16.msra.mxu0 %v1044
      %1317 = vmatprep.subr.bf16.mxu0 %v1036
      %1318 = vmatpush1.bf16.msra.mxu0 %v1035
      %1319 = vmatprep.subr.bf16.mxu0 0
      %1320 = vmatpush2.bf16.msra.mxu0 0
      %1321 = vmatprep.subr.bf16.mxu0 0
      %1322 = vmatpush2.bf16.msra.mxu0 0
      %1323 = vmatprep.subr.bf16.mxu0 0
      %1324 = vmatpush2.bf16.msra.mxu0 0
      %1325 = vmatprep.subr.bf16.mxu0 0
      %1326 = vmatpush2.bf16.msra.mxu0 0
      %1327 = vmatprep.subr.bf16.mxu0 0
      %1328 = vmatpush2.bf16.msra.mxu0 0
      %1329 = vmatprep.subr.bf16.mxu0 0
      %1330 = vmatpush2.bf16.msra.mxu0 0
      %1331 = vmatprep.subr.bf16.mxu0 0
      %1332 = vmatpush2.bf16.msra.mxu0 0
      %1333 = vmatprep.subr.bf16.mxu0 0
      %1334 = vmatpush2.bf16.msra.mxu0 0
      %1335 = vmatprep.mubr.bf16.mxu0 0
      %1336 = vmatmul.mubr.bf16.gmra.mxu0 %v719
      %v1337 = vpop.f32.mrf.mxu0
      %v1338 = vadd.f32 0.0, %v1337
      %v1339 = vpop.f32.mrf.mxu0
      %v1340 = vpop.f32.mrf.mxu0
      %v1341 = vadd.f32 0.0, %v1340
      %v1342 = vpop.f32.mrf.mxu0
      %v1343 = vadd.f32 0.0, %v1342
      %1344 = vmatprep.mubr.bf16.mxu0 0
      %1345 = vmatmul.mubr.bf16.gmra.mxu0 %v720
      %v1346 = vpop.f32.mrf.mxu0
      %v1347 = vadd.f32 0.0, %v1346
      %v1348 = vpop.f32.mrf.mxu0
      %v1349 = vadd.f32 0.0, %v1348
      %v1350 = vpop.f32.mrf.mxu0
      %v1351 = vadd.f32 0.0, %v1350
      %v1352 = vpop.f32.mrf.mxu0
      %v1353 = vadd.f32 0.0, %v1352
      %1354 = vmatprep.mubr.bf16.mxu0 0
      %1355 = vmatmul.mubr.bf16.gmra.mxu0 %v721
      %v1356 = vpop.f32.mrf.mxu0
      %v1357 = vadd.f32 0.0, %v1356
      %v1358 = vpop.f32.mrf.mxu0
      %v1359 = vadd.f32 0.0, %v1358
      %v1360 = vpop.f32.mrf.mxu0
      %v1361 = vadd.f32 0.0, %v1360
      %v1362 = vpop.f32.mrf.mxu0
      %v1363 = vadd.f32 0.0, %v1362
      %1364 = vmatprep.mubr.bf16.mxu0 0
      %1365 = vmatmul.mubr.bf16.gmra.mxu0 %v722
      %v1366 = vpop.f32.mrf.mxu0
      %v1367 = vadd.f32 0.0, %v1366
      %v1368 = vpop.f32.mrf.mxu0
      %v1369 = vadd.f32 0.0, %v1368
      %v1370 = vpop.f32.mrf.mxu0
      %v1371 = vadd.f32 0.0, %v1370
      %v1372 = vpop.f32.mrf.mxu0
      %v1373 = vadd.f32 0.0, %v1372
      %1374 = vmatprep.mubr.bf16.mxu0 0
      %1375 = vmatmul.mubr.bf16.gmra.mxu0 %v723
      %v1376 = vpop.f32.mrf.mxu0
      %v1377 = vadd.f32 0.0, %v1376
      %v1378 = vpop.f32.mrf.mxu0
      %v1379 = vadd.f32 0.0, %v1378
      %v1380 = vpop.f32.mrf.mxu0
      %v1381 = vadd.f32 0.0, %v1380
      %v1382 = vpop.f32.mrf.mxu0
      %v1383 = vadd.f32 0.0, %v1382
      %1384 = vmatprep.mubr.bf16.mxu0 0
      %1385 = vmatmul.mubr.bf16.gmra.mxu0 %v724
      %v1386 = vpop.f32.mrf.mxu0
      %v1387 = vadd.f32 0.0, %v1386
      %v1388 = vpop.f32.mrf.mxu0
      %v1389 = vadd.f32 0.0, %v1388
      %v1390 = vpop.f32.mrf.mxu0
      %v1391 = vadd.f32 0.0, %v1390
      %v1392 = vpop.f32.mrf.mxu0
      %v1393 = vadd.f32 0.0, %v1392
      %1394 = vmatprep.mubr.bf16.mxu0 0
      %1395 = vmatmul.mubr.bf16.gmra.mxu0 %v725
      %v1396 = vpop.f32.mrf.mxu0
      %v1397 = vadd.f32 0.0, %v1396
      %v1398 = vpop.f32.mrf.mxu0
      %v1399 = vadd.f32 0.0, %v1398
      %v1400 = vpop.f32.mrf.mxu0
      %v1401 = vadd.f32 0.0, %v1400
      %v1402 = vpop.f32.mrf.mxu0
      %v1403 = vadd.f32 0.0, %v1402
      %1404 = vmatprep.mubr.bf16.mxu0 0
      %1405 = vmatmul.mubr.bf16.gmra.mxu0 %v726
      %v1406 = vpop.f32.mrf.mxu0
      %v1407 = vadd.f32 0.0, %v1406
      %v1408 = vpop.f32.mrf.mxu0
      %v1409 = vadd.f32 0.0, %v1408
      %v1410 = vpop.f32.mrf.mxu0
      %v1411 = vadd.f32 0.0, %v1410
      %v1412 = vpop.f32.mrf.mxu0
      %v1413 = vadd.f32 0.0, %v1412
      %1414 = vmatprep.mubr.bf16.mxu0 0
      %1415 = vmatmul.mubr.bf16.gmra.mxu0 %v727
      %v1416 = vpop.f32.mrf.mxu0
      %v1417 = vadd.f32 0.0, %v1416
      %v1418 = vpop.f32.mrf.mxu0
      %v1419 = vadd.f32 0.0, %v1418
      %v1420 = vpop.f32.mrf.mxu0
      %v1421 = vpop.f32.mrf.mxu0
      %v1422 = vadd.f32 0.0, %v1421
      %1423 = vmatprep.mubr.bf16.mxu0 0
      %1424 = vmatmul.mubr.bf16.gmra.mxu0 %v728
      %v1425 = vpop.f32.mrf.mxu0
      %v1426 = vpop.f32.mrf.mxu0
      %v1427 = vpop.f32.mrf.mxu0
      %v1428 = vpop.f32.mrf.mxu0
      %1429 = vdwg.mxu0
      %1430 = vmatprep.subr.bf16.mxu0 %v1101
      %1431 = vmatpush1.bf16.msra.mxu0 %v1100
      %1432 = vmatprep.subr.bf16.mxu0 %v1092
      %1433 = vmatpush1.bf16.msra.mxu0 %v1091
      %1434 = vmatprep.subr.bf16.mxu0 %v1083
      %1435 = vmatpush1.bf16.msra.mxu0 %v1082
      %1436 = vmatprep.subr.bf16.mxu0 %v1074
      %1437 = vmatpush1.bf16.msra.mxu0 %v1073
      %1438 = vmatprep.subr.bf16.mxu0 %v1065
      %1439 = vmatpush1.bf16.msra.mxu0 %v1064
      %1440 = vmatprep.subr.bf16.mxu0 %v1056
      %1441 = vmatpush1.bf16.msra.mxu0 %v1055
      %1442 = vmatprep.subr.bf16.mxu0 %v1047
      %1443 = vmatpush1.bf16.msra.mxu0 %v1046
      %1444 = vmatprep.subr.bf16.mxu0 %v1038
      %1445 = vmatpush1.bf16.msra.mxu0 %v1037
      %1446 = vmatprep.subr.bf16.mxu0 0
      %1447 = vmatpush2.bf16.msra.mxu0 0
      %1448 = vmatprep.subr.bf16.mxu0 0
      %1449 = vmatpush2.bf16.msra.mxu0 0
      %1450 = vmatprep.subr.bf16.mxu0 0
      %1451 = vmatpush2.bf16.msra.mxu0 0
      %1452 = vmatprep.subr.bf16.mxu0 0
      %1453 = vmatpush2.bf16.msra.mxu0 0
      %1454 = vmatprep.subr.bf16.mxu0 0
      %1455 = vmatpush2.bf16.msra.mxu0 0
      %1456 = vmatprep.subr.bf16.mxu0 0
      %1457 = vmatpush2.bf16.msra.mxu0 0
      %1458 = vmatprep.subr.bf16.mxu0 0
      %1459 = vmatpush2.bf16.msra.mxu0 0
      %1460 = vmatprep.subr.bf16.mxu0 0
      %1461 = vmatpush2.bf16.msra.mxu0 0
      %1462 = vmatprep.mubr.bf16.mxu0 0
      %1463 = vmatmul.mubr.bf16.gmra.mxu0 %v719
      %v1464 = vpop.f32.mrf.mxu0
      %v1465 = vpop.f32.mrf.mxu0
      %v1466 = vpop.f32.mrf.mxu0
      %v1467 = vpop.f32.mrf.mxu0
      %1468 = vmatprep.mubr.bf16.mxu0 0
      %1469 = vmatmul.mubr.bf16.gmra.mxu0 %v720
      %v1470 = vpop.f32.mrf.mxu0
      %v1471 = vadd.f32 0.0, %v1470
      %v1472 = vpop.f32.mrf.mxu0
      %v1473 = vadd.f32 0.0, %v1472
      %v1474 = vpop.f32.mrf.mxu0
      %v1475 = vadd.f32 0.0, %v1474
      %v1476 = vpop.f32.mrf.mxu0
      %v1477 = vadd.f32 0.0, %v1476
      %1478 = vmatprep.mubr.bf16.mxu0 0
      %1479 = vmatmul.mubr.bf16.gmra.mxu0 %v721
      %v1480 = vpop.f32.mrf.mxu0
      %v1481 = vadd.f32 0.0, %v1480
      %v1482 = vpop.f32.mrf.mxu0
      %v1483 = vadd.f32 0.0, %v1482
      %v1484 = vpop.f32.mrf.mxu0
      %v1485 = vadd.f32 0.0, %v1484
      %v1486 = vpop.f32.mrf.mxu0
      %v1487 = vadd.f32 0.0, %v1486
      %1488 = vmatprep.mubr.bf16.mxu0 0
      %1489 = vmatmul.mubr.bf16.gmra.mxu0 %v722
      %v1490 = vpop.f32.mrf.mxu0
      %v1491 = vadd.f32 0.0, %v1490
      %v1492 = vpop.f32.mrf.mxu0
      %v1493 = vadd.f32 0.0, %v1492
      %v1494 = vpop.f32.mrf.mxu0
      %v1495 = vadd.f32 0.0, %v1494
      %v1496 = vpop.f32.mrf.mxu0
      %v1497 = vadd.f32 0.0, %v1496
      %1498 = vmatprep.mubr.bf16.mxu0 0
      %1499 = vmatmul.mubr.bf16.gmra.mxu0 %v723
      %v1500 = vpop.f32.mrf.mxu0
      %v1501 = vadd.f32 0.0, %v1500
      %v1502 = vpop.f32.mrf.mxu0
      %v1503 = vadd.f32 0.0, %v1502
      %v1504 = vpop.f32.mrf.mxu0
      %v1505 = vadd.f32 0.0, %v1504
      %v1506 = vpop.f32.mrf.mxu0
      %v1507 = vadd.f32 0.0, %v1506
      %1508 = vmatprep.mubr.bf16.mxu0 0
      %1509 = vmatmul.mubr.bf16.gmra.mxu0 %v724
      %v1510 = vpop.f32.mrf.mxu0
      %v1511 = vadd.f32 0.0, %v1510
      %v1512 = vpop.f32.mrf.mxu0
      %v1513 = vadd.f32 0.0, %v1512
      %v1514 = vpop.f32.mrf.mxu0
      %v1515 = vadd.f32 0.0, %v1514
      %v1516 = vpop.f32.mrf.mxu0
      %v1517 = vadd.f32 0.0, %v1516
      %1518 = vmatprep.mubr.bf16.mxu0 0
      %1519 = vmatmul.mubr.bf16.gmra.mxu0 %v725
      %v1520 = vpop.f32.mrf.mxu0
      %v1521 = vadd.f32 0.0, %v1520
      %v1522 = vpop.f32.mrf.mxu0
      %v1523 = vadd.f32 0.0, %v1522
      %v1524 = vpop.f32.mrf.mxu0
      %v1525 = vadd.f32 0.0, %v1524
      %v1526 = vpop.f32.mrf.mxu0
      %v1527 = vadd.f32 0.0, %v1526
      %1528 = vmatprep.mubr.bf16.mxu0 0
      %1529 = vmatmul.mubr.bf16.gmra.mxu0 %v726
      %v1530 = vpop.f32.mrf.mxu0
      %v1531 = vadd.f32 0.0, %v1530
      %v1532 = vpop.f32.mrf.mxu0
      %v1533 = vadd.f32 0.0, %v1532
      %v1534 = vpop.f32.mrf.mxu0
      %v1535 = vadd.f32 0.0, %v1534
      %v1536 = vpop.f32.mrf.mxu0
      %v1537 = vadd.f32 0.0, %v1536
      %1538 = vmatprep.mubr.bf16.mxu0 0
      %1539 = vmatmul.mubr.bf16.gmra.mxu0 %v727
      %v1540 = vpop.f32.mrf.mxu0
      %v1541 = vadd.f32 0.0, %v1540
      %v1542 = vpop.f32.mrf.mxu0
      %v1543 = vadd.f32 0.0, %v1542
      %v1544 = vpop.f32.mrf.mxu0
      %v1545 = vadd.f32 0.0, %v1544
      %v1546 = vpop.f32.mrf.mxu0
      %v1547 = vadd.f32 0.0, %v1546
      %1548 = vmatprep.mubr.bf16.mxu0 0
      %1549 = vmatmul.mubr.bf16.gmra.mxu0 %v728
      %v1550 = vpop.f32.mrf.mxu0
      %v1551 = vpop.f32.mrf.mxu0
      %v1552 = vadd.f32 0.0, %v1551
      %v1553 = vpop.f32.mrf.mxu0
      %v1554 = vpop.f32.mrf.mxu0
      %1555 = vdwg.mxu0
      %1556 = vmatprep.subr.bf16.mxu0 %v1103
      %1557 = vmatpush1.bf16.msra.mxu0 %v1102
      %1558 = vmatprep.subr.bf16.mxu0 %v1094
      %1559 = vmatpush1.bf16.msra.mxu0 %v1093
      %1560 = vmatprep.subr.bf16.mxu0 %v1085
      %1561 = vmatpush1.bf16.msra.mxu0 %v1084
      %1562 = vmatprep.subr.bf16.mxu0 %v1076
      %1563 = vmatpush1.bf16.msra.mxu0 %v1075
      %1564 = vmatprep.subr.bf16.mxu0 %v1067
      %1565 = vmatpush1.bf16.msra.mxu0 %v1066
      %1566 = vmatprep.subr.bf16.mxu0 %v1058
      %1567 = vmatpush1.bf16.msra.mxu0 %v1057
      %1568 = vmatprep.subr.bf16.mxu0 %v1049
      %1569 = vmatpush1.bf16.msra.mxu0 %v1048
      %1570 = vmatprep.subr.bf16.mxu0 %v1040
      %1571 = vmatpush1.bf16.msra.mxu0 %v1039
      %1572 = vmatprep.subr.bf16.mxu0 0
      %1573 = vmatpush2.bf16.msra.mxu0 0
      %1574 = vmatprep.subr.bf16.mxu0 0
      %1575 = vmatpush2.bf16.msra.mxu0 0
      %1576 = vmatprep.subr.bf16.mxu0 0
      %1577 = vmatpush2.bf16.msra.mxu0 0
      %1578 = vmatprep.subr.bf16.mxu0 0
      %1579 = vmatpush2.bf16.msra.mxu0 0
      %1580 = vmatprep.subr.bf16.mxu0 0
      %1581 = vmatpush2.bf16.msra.mxu0 0
      %1582 = vmatprep.subr.bf16.mxu0 0
      %1583 = vmatpush2.bf16.msra.mxu0 0
      %1584 = vmatprep.subr.bf16.mxu0 0
      %1585 = vmatpush2.bf16.msra.mxu0 0
      %1586 = vmatprep.subr.bf16.mxu0 0
      %1587 = vmatpush2.bf16.msra.mxu0 0
      %1588 = vmatprep.mubr.bf16.mxu0 0
      %1589 = vmatmul.mubr.bf16.gmra.mxu0 %v719
      %v1590 = vpop.f32.mrf.mxu0
      %v1591 = vpop.f32.mrf.mxu0
      %v1592 = vpop.f32.mrf.mxu0
      %v1593 = vpop.f32.mrf.mxu0
      %1594 = vmatprep.mubr.bf16.mxu0 0
      %1595 = vmatmul.mubr.bf16.gmra.mxu0 %v720
      %v1596 = vpop.f32.mrf.mxu0
      %v1597 = vpop.f32.mrf.mxu0
      %v1598 = vpop.f32.mrf.mxu0
      %v1599 = vadd.f32 0.0, %v1598
      %v1600 = vpop.f32.mrf.mxu0
      %1601 = vmatprep.mubr.bf16.mxu0 0
      %1602 = vmatmul.mubr.bf16.gmra.mxu0 %v721
      %v1603 = vpop.f32.mrf.mxu0
      %v1604 = vadd.f32 0.0, %v1603
      %v1605 = vpop.f32.mrf.mxu0
      %v1606 = vadd.f32 0.0, %v1605
      %v1607 = vpop.f32.mrf.mxu0
      %v1608 = vadd.f32 0.0, %v1607
      %v1609 = vpop.f32.mrf.mxu0
      %v1610 = vadd.f32 0.0, %v1609
      %1611 = vmatprep.mubr.bf16.mxu0 0
      %1612 = vmatmul.mubr.bf16.gmra.mxu0 %v722
      %v1613 = vpop.f32.mrf.mxu0
      %v1614 = vadd.f32 0.0, %v1613
      %v1615 = vpop.f32.mrf.mxu0
      %v1616 = vadd.f32 0.0, %v1615
      %v1617 = vpop.f32.mrf.mxu0
      %v1618 = vadd.f32 0.0, %v1617
      %v1619 = vpop.f32.mrf.mxu0
      %v1620 = vadd.f32 0.0, %v1619
      %1621 = vmatprep.mubr.bf16.mxu0 0
      %1622 = vmatmul.mubr.bf16.gmra.mxu0 %v723
      %v1623 = vpop.f32.mrf.mxu0
      %v1624 = vadd.f32 0.0, %v1623
      %v1625 = vpop.f32.mrf.mxu0
      %v1626 = vadd.f32 0.0, %v1625
      %v1627 = vpop.f32.mrf.mxu0
      %v1628 = vadd.f32 0.0, %v1627
      %v1629 = vpop.f32.mrf.mxu0
      %v1630 = vadd.f32 0.0, %v1629
      %1631 = vmatprep.mubr.bf16.mxu0 0
      %1632 = vmatmul.mubr.bf16.gmra.mxu0 %v724
      %v1633 = vpop.f32.mrf.mxu0
      %v1634 = vadd.f32 0.0, %v1633
      %v1635 = vpop.f32.mrf.mxu0
      %v1636 = vadd.f32 0.0, %v1635
      %v1637 = vpop.f32.mrf.mxu0
      %v1638 = vadd.f32 0.0, %v1637
      %v1639 = vpop.f32.mrf.mxu0
      %v1640 = vadd.f32 0.0, %v1639
      %1641 = vmatprep.mubr.bf16.mxu0 0
      %1642 = vmatmul.mubr.bf16.gmra.mxu0 %v725
      %v1643 = vpop.f32.mrf.mxu0
      %v1644 = vadd.f32 0.0, %v1643
      %v1645 = vpop.f32.mrf.mxu0
      %v1646 = vadd.f32 0.0, %v1645
      %v1647 = vpop.f32.mrf.mxu0
      %v1648 = vadd.f32 0.0, %v1647
      %v1649 = vpop.f32.mrf.mxu0
      %v1650 = vadd.f32 0.0, %v1649
      %1651 = vmatprep.mubr.bf16.mxu0 0
      %1652 = vmatmul.mubr.bf16.gmra.mxu0 %v726
      %v1653 = vpop.f32.mrf.mxu0
      %v1654 = vadd.f32 0.0, %v1653
      %v1655 = vpop.f32.mrf.mxu0
      %v1656 = vadd.f32 0.0, %v1655
      %v1657 = vpop.f32.mrf.mxu0
      %v1658 = vadd.f32 0.0, %v1657
      %v1659 = vpop.f32.mrf.mxu0
      %v1660 = vadd.f32 0.0, %v1659
      %1661 = vmatprep.mubr.bf16.mxu0 0
      %1662 = vmatmul.mubr.bf16.gmra.mxu0 %v727
      %v1663 = vpop.f32.mrf.mxu0
      %v1664 = vadd.f32 0.0, %v1663
      %v1665 = vpop.f32.mrf.mxu0
      %v1666 = vadd.f32 0.0, %v1665
      %v1667 = vpop.f32.mrf.mxu0
      %v1668 = vadd.f32 0.0, %v1667
      %v1669 = vpop.f32.mrf.mxu0
      %v1670 = vadd.f32 0.0, %v1669
      %1671 = vmatprep.mubr.bf16.mxu0 0
      %1672 = vmatmul.mubr.bf16.gmra.mxu0 %v728
      %v1673 = vpop.f32.mrf.mxu0
      %v1674 = vadd.f32 0.0, %v1673
      %v1675 = vpop.f32.mrf.mxu0
      %v1676 = vadd.f32 0.0, %v1675
      %v1677 = vpop.f32.mrf.mxu0
      %v1678 = vadd.f32 0.0, %v1677
      %v1679 = vpop.f32.mrf.mxu0
      %v1680 = vadd.f32 0.0, %v1679
      %1681 = vdwg.mxu0
      %1682 = vmatprep.subr.bf16.mxu0 0
      %1683 = vmatpush1.bf16.msra.mxu0 %v1104
      %1684 = vmatprep.subr.bf16.mxu0 0
      %1685 = vmatpush1.bf16.msra.mxu0 %v1095
      %1686 = vmatprep.subr.bf16.mxu0 0
      %1687 = vmatpush1.bf16.msra.mxu0 %v1086
      %1688 = vmatprep.subr.bf16.mxu0 0
      %1689 = vmatpush1.bf16.msra.mxu0 %v1077
      %1690 = vmatprep.subr.bf16.mxu0 0
      %1691 = vmatpush1.bf16.msra.mxu0 %v1068
      %1692 = vmatprep.subr.bf16.mxu0 0
      %1693 = vmatpush1.bf16.msra.mxu0 %v1059
      %1694 = vmatprep.subr.bf16.mxu0 0
      %1695 = vmatpush1.bf16.msra.mxu0 %v1050
      %1696 = vmatprep.subr.bf16.mxu0 0
      %1697 = vmatpush1.bf16.msra.mxu0 %v1041
      %1698 = vmatprep.subr.bf16.mxu0 0
      %1699 = vmatpush2.bf16.msra.mxu0 0
      %1700 = vmatprep.subr.bf16.mxu0 0
      %1701 = vmatpush2.bf16.msra.mxu0 0
      %1702 = vmatprep.subr.bf16.mxu0 0
      %1703 = vmatpush2.bf16.msra.mxu0 0
      %1704 = vmatprep.subr.bf16.mxu0 0
      %1705 = vmatpush2.bf16.msra.mxu0 0
      %1706 = vmatprep.subr.bf16.mxu0 0
      %1707 = vmatpush2.bf16.msra.mxu0 0
      %1708 = vmatprep.subr.bf16.mxu0 0
      %1709 = vmatpush2.bf16.msra.mxu0 0
      %1710 = vmatprep.subr.bf16.mxu0 0
      %1711 = vmatpush2.bf16.msra.mxu0 0
      %1712 = vmatprep.subr.bf16.mxu0 0
      %1713 = vmatpush2.bf16.msra.mxu0 0
      %1714 = vmatprep.mubr.bf16.mxu0 0
      %1715 = vmatmul.mubr.bf16.gmra.mxu0 %v719
      %v1716 = vpop.f32.mrf.mxu0
      %v1717 = vadd.f32 0.0, %v1716
      %v1718 = vpop.f32.mrf.mxu0
      %v1719 = vpop.f32.mrf.mxu0
      %v1720 = vpop.f32.mrf.mxu0
      %1721 = vmatprep.mubr.bf16.mxu0 0
      %1722 = vmatmul.mubr.bf16.gmra.mxu0 %v720
      %v1723 = vpop.f32.mrf.mxu0
      %v1724 = vpop.f32.mrf.mxu0
      %v1725 = vpop.f32.mrf.mxu0
      %v1726 = vpop.f32.mrf.mxu0
      %1727 = vmatprep.mubr.bf16.mxu0 0
      %1728 = vmatmul.mubr.bf16.gmra.mxu0 %v721
      %v1729 = vpop.f32.mrf.mxu0
      %v1730 = vadd.f32 0.0, %v1729
      %v1731 = vpop.f32.mrf.mxu0
      %v1732 = vpop.f32.mrf.mxu0
      %v1733 = vadd.f32 0.0, %v1732
      %v1734 = vpop.f32.mrf.mxu0
      %1735 = vmatprep.mubr.bf16.mxu0 0
      %1736 = vmatmul.mubr.bf16.gmra.mxu0 %v722
      %v1737 = vpop.f32.mrf.mxu0
      %v1738 = vadd.f32 0.0, %v1737
      %v1739 = vpop.f32.mrf.mxu0
      %v1740 = vpop.f32.mrf.mxu0
      %v1741 = vadd.f32 0.0, %v1740
      %v1742 = vpop.f32.mrf.mxu0
      %1743 = vmatprep.mubr.bf16.mxu0 0
      %1744 = vmatmul.mubr.bf16.gmra.mxu0 %v723
      %v1745 = vpop.f32.mrf.mxu0
      %v1746 = vadd.f32 0.0, %v1745
      %v1747 = vpop.f32.mrf.mxu0
      %v1748 = vpop.f32.mrf.mxu0
      %v1749 = vadd.f32 0.0, %v1748
      %v1750 = vpop.f32.mrf.mxu0
      %1751 = vmatprep.mubr.bf16.mxu0 0
      %1752 = vmatmul.mubr.bf16.gmra.mxu0 %v724
      %v1753 = vpop.f32.mrf.mxu0
      %v1754 = vadd.f32 0.0, %v1753
      %v1755 = vpop.f32.mrf.mxu0
      %v1756 = vpop.f32.mrf.mxu0
      %v1757 = vadd.f32 0.0, %v1756
      %v1758 = vpop.f32.mrf.mxu0
      %1759 = vmatprep.mubr.bf16.mxu0 0
      %1760 = vmatmul.mubr.bf16.gmra.mxu0 %v725
      %v1761 = vpop.f32.mrf.mxu0
      %v1762 = vadd.f32 0.0, %v1761
      %v1763 = vpop.f32.mrf.mxu0
      %v1764 = vpop.f32.mrf.mxu0
      %v1765 = vadd.f32 0.0, %v1764
      %v1766 = vpop.f32.mrf.mxu0
      %1767 = vmatprep.mubr.bf16.mxu0 0
      %1768 = vmatmul.mubr.bf16.gmra.mxu0 %v726
      %v1769 = vpop.f32.mrf.mxu0
      %v1770 = vadd.f32 0.0, %v1769
      %v1771 = vpop.f32.mrf.mxu0
      %v1772 = vpop.f32.mrf.mxu0
      %v1773 = vadd.f32 0.0, %v1772
      %v1774 = vpop.f32.mrf.mxu0
      %1775 = vmatprep.mubr.bf16.mxu0 0
      %1776 = vmatmul.mubr.bf16.gmra.mxu0 %v727
      %v1777 = vpop.f32.mrf.mxu0
      %v1778 = vadd.f32 0.0, %v1777
      %v1779 = vpop.f32.mrf.mxu0
      %v1780 = vpop.f32.mrf.mxu0
      %v1781 = vadd.f32 0.0, %v1780
      %v1782 = vpop.f32.mrf.mxu0
      %1783 = vmatprep.mubr.bf16.mxu0 0
      %1784 = vmatmul.mubr.bf16.gmra.mxu0 %v728
      %v1785 = vpop.f32.mrf.mxu0
      %v1786 = vadd.f32 0.0, %v1785
      %v1787 = vpop.f32.mrf.mxu0
      %v1788 = vpop.f32.mrf.mxu0
      %v1789 = vadd.f32 0.0, %v1788
      %v1790 = vpop.f32.mrf.mxu0
      %1791 = vdwg.mxu0
      %vm1792 = vcmp.lt.s32.totalorder %v558, 0
      %v1793 = vsub.s32 0, %v558
      %v1794 = vsel %vm1792, %v1793, %v558
      %v1795 = vshrl.u32 %v1794, 4
      %v1796 = vand.u32 %v1794, 15
      %v1797 = vsub.s32 0, %v1796
      %v1798 = vsel %vm1792, %v1797, %v1796
      %vm1799 = vcmp.lt.s32.totalorder %v559, 0
      %v1800 = vsub.s32 0, %v559
      %v1801 = vsel %vm1799, %v1800, %v559
      %v1802 = vshrl.u32 %v1801, 4
      %v1803 = vand.u32 %v1801, 15
      %v1804 = vsub.s32 0, %v1803
      %v1805 = vsel %vm1799, %v1804, %v1803
      %vm1806 = vcmp.lt.s32.totalorder %v560, 0
      %v1807 = vsub.s32 0, %v560
      %v1808 = vsel %vm1806, %v1807, %v560
      %v1809 = vshrl.u32 %v1808, 4
      %v1810 = vand.u32 %v1808, 15
      %v1811 = vsub.s32 0, %v1810
      %v1812 = vsel %vm1806, %v1811, %v1810
      %vm1813 = vcmp.lt.s32.totalorder %v561, 0
      %v1814 = vsub.s32 0, %v561
      %v1815 = vsel %vm1813, %v1814, %v561
      %v1816 = vshrl.u32 %v1815, 4
      %v1817 = vand.u32 %v1815, 15
      %v1818 = vsub.s32 0, %v1817
      %v1819 = vsel %vm1813, %v1818, %v1817
      %vm1820 = vcmp.lt.s32.totalorder %v562, 0
      %v1821 = vsub.s32 0, %v562
      %v1822 = vsel %vm1820, %v1821, %v562
      %v1823 = vshrl.u32 %v1822, 4
      %v1824 = vand.u32 %v1822, 15
      %v1825 = vsub.s32 0, %v1824
      %v1826 = vsel %vm1820, %v1825, %v1824
      %vm1827 = vcmp.lt.s32.totalorder %v563, 0
      %v1828 = vsub.s32 0, %v563
      %v1829 = vsel %vm1827, %v1828, %v563
      %v1830 = vshrl.u32 %v1829, 4
      %v1831 = vand.u32 %v1829, 15
      %v1832 = vsub.s32 0, %v1831
      %v1833 = vsel %vm1827, %v1832, %v1831
      %vm1834 = vcmp.lt.s32.totalorder %v564, 0
      %v1835 = vsub.s32 0, %v564
      %v1836 = vsel %vm1834, %v1835, %v564
      %v1837 = vshrl.u32 %v1836, 4
      %v1838 = vand.u32 %v1836, 15
      %v1839 = vsub.s32 0, %v1838
      %v1840 = vsel %vm1834, %v1839, %v1838
      %vm1841 = vcmp.lt.s32.totalorder %v565, 0
      %v1842 = vsub.s32 0, %v565
      %v1843 = vsel %vm1841, %v1842, %v565
      %v1844 = vshrl.u32 %v1843, 4
      %v1845 = vand.u32 %v1843, 15
      %v1846 = vsub.s32 0, %v1845
      %v1847 = vsel %vm1841, %v1846, %v1845
      %vm1848 = vcmp.lt.s32.totalorder %v566, 0
      %v1849 = vsub.s32 0, %v566
      %v1850 = vsel %vm1848, %v1849, %v566
      %v1851 = vshrl.u32 %v1850, 4
      %v1852 = vand.u32 %v1850, 15
      %v1853 = vsub.s32 0, %v1852
      %v1854 = vsel %vm1848, %v1853, %v1852
      %vm1855 = vcmp.lt.s32.totalorder %v567, 0
      %v1856 = vsub.s32 0, %v567
      %v1857 = vsel %vm1855, %v1856, %v567
      %v1858 = vshrl.u32 %v1857, 4
      %v1859 = vand.u32 %v1857, 15
      %v1860 = vsub.s32 0, %v1859
      %v1861 = vsel %vm1855, %v1860, %v1859
      %vm1862 = vcmp.lt.s32.totalorder %v568, 0
      %v1863 = vsub.s32 0, %v568
      %v1864 = vsel %vm1862, %v1863, %v568
      %v1865 = vshrl.u32 %v1864, 4
      %v1866 = vand.u32 %v1864, 15
      %v1867 = vsub.s32 0, %v1866
      %v1868 = vsel %vm1862, %v1867, %v1866
      %vm1869 = vcmp.lt.s32.totalorder %v569, 0
      %v1870 = vsub.s32 0, %v569
      %v1871 = vsel %vm1869, %v1870, %v569
      %v1872 = vshrl.u32 %v1871, 4
      %v1873 = vand.u32 %v1871, 15
      %v1874 = vsub.s32 0, %v1873
      %v1875 = vsel %vm1869, %v1874, %v1873
      %vm1876 = vcmp.lt.s32.totalorder %v570, 0
      %v1877 = vsub.s32 0, %v570
      %v1878 = vsel %vm1876, %v1877, %v570
      %v1879 = vshrl.u32 %v1878, 4
      %v1880 = vand.u32 %v1878, 15
      %v1881 = vsub.s32 0, %v1880
      %v1882 = vsel %vm1876, %v1881, %v1880
      %vm1883 = vcmp.lt.s32.totalorder %v571, 0
      %v1884 = vsub.s32 0, %v571
      %v1885 = vsel %vm1883, %v1884, %v571
      %v1886 = vshrl.u32 %v1885, 4
      %v1887 = vand.u32 %v1885, 15
      %v1888 = vsub.s32 0, %v1887
      %v1889 = vsel %vm1883, %v1888, %v1887
      %vm1890 = vcmp.lt.s32.totalorder %v572, 0
      %v1891 = vsub.s32 0, %v572
      %v1892 = vsel %vm1890, %v1891, %v572
      %v1893 = vshrl.u32 %v1892, 4
      %v1894 = vand.u32 %v1892, 15
      %v1895 = vsub.s32 0, %v1894
      %v1896 = vsel %vm1890, %v1895, %v1894
      %vm1897 = vcmp.lt.s32.totalorder %v573, 0
      %v1898 = vsub.s32 0, %v573
      %v1899 = vsel %vm1897, %v1898, %v573
      %v1900 = vshrl.u32 %v1899, 4
      %v1901 = vand.u32 %v1899, 15
      %v1902 = vsub.s32 0, %v1901
      %v1903 = vsel %vm1897, %v1902, %v1901
      %vm1904 = vcmp.ne.s32.totalorder %v1798, 0
      %vm1905 = vcmp.ne.s32.totalorder %v1805, 0
      %vm1906 = vcmp.ne.s32.totalorder %v1812, 0
      %vm1907 = vcmp.ne.s32.totalorder %v1819, 0
      %vm1908 = vcmp.ne.s32.totalorder %v1826, 0
      %vm1909 = vcmp.ne.s32.totalorder %v1833, 0
      %vm1910 = vcmp.ne.s32.totalorder %v1840, 0
      %vm1911 = vcmp.ne.s32.totalorder %v1847, 0
      %vm1912 = vcmp.ne.s32.totalorder %v1854, 0
      %vm1913 = vcmp.ne.s32.totalorder %v1861, 0
      %vm1914 = vcmp.ne.s32.totalorder %v1868, 0
      %vm1915 = vcmp.ne.s32.totalorder %v1875, 0
      %vm1916 = vcmp.ne.s32.totalorder %v1882, 0
      %vm1917 = vcmp.ne.s32.totalorder %v1889, 0
      %vm1918 = vcmp.ne.s32.totalorder %v1896, 0
      %vm1919 = vcmp.ne.s32.totalorder %v1903, 0
      %vm1920 = vcmp.lt.s32.totalorder %v1798, 0
      %vm1921 = vcmp.lt.s32.totalorder %v1805, 0
      %vm1922 = vcmp.lt.s32.totalorder %v1812, 0
      %vm1923 = vcmp.lt.s32.totalorder %v1819, 0
      %vm1924 = vcmp.lt.s32.totalorder %v1826, 0
      %vm1925 = vcmp.lt.s32.totalorder %v1833, 0
      %vm1926 = vcmp.lt.s32.totalorder %v1840, 0
      %vm1927 = vcmp.lt.s32.totalorder %v1847, 0
      %vm1928 = vcmp.lt.s32.totalorder %v1854, 0
      %vm1929 = vcmp.lt.s32.totalorder %v1861, 0
      %vm1930 = vcmp.lt.s32.totalorder %v1868, 0
      %vm1931 = vcmp.lt.s32.totalorder %v1875, 0
      %vm1932 = vcmp.lt.s32.totalorder %v1882, 0
      %vm1933 = vcmp.lt.s32.totalorder %v1889, 0
      %vm1934 = vcmp.lt.s32.totalorder %v1896, 0
      %vm1935 = vcmp.lt.s32.totalorder %v1903, 0
      %vm1936 = vmand %vm1920, %vm1904
      %vm1937 = vmand %vm1921, %vm1905
      %vm1938 = vmand %vm1922, %vm1906
      %vm1939 = vmand %vm1923, %vm1907
      %vm1940 = vmand %vm1924, %vm1908
      %vm1941 = vmand %vm1925, %vm1909
      %vm1942 = vmand %vm1926, %vm1910
      %vm1943 = vmand %vm1927, %vm1911
      %vm1944 = vmand %vm1928, %vm1912
      %vm1945 = vmand %vm1929, %vm1913
      %vm1946 = vmand %vm1930, %vm1914
      %vm1947 = vmand %vm1931, %vm1915
      %vm1948 = vmand %vm1932, %vm1916
      %vm1949 = vmand %vm1933, %vm1917
      %vm1950 = vmand %vm1934, %vm1918
      %vm1951 = vmand %vm1935, %vm1919
      %v1952 = vadd.s32 %v1798, 16
      %v1953 = vadd.s32 %v1805, 16
      %v1954 = vadd.s32 %v1812, 16
      %v1955 = vadd.s32 %v1819, 16
      %v1956 = vadd.s32 %v1826, 16
      %v1957 = vadd.s32 %v1833, 16
      %v1958 = vadd.s32 %v1840, 16
      %v1959 = vadd.s32 %v1847, 16
      %v1960 = vadd.s32 %v1854, 16
      %v1961 = vadd.s32 %v1861, 16
      %v1962 = vadd.s32 %v1868, 16
      %v1963 = vadd.s32 %v1875, 16
      %v1964 = vadd.s32 %v1882, 16
      %v1965 = vadd.s32 %v1889, 16
      %v1966 = vadd.s32 %v1896, 16
      %v1967 = vadd.s32 %v1903, 16
      %v1968 = vsel %vm1936, %v1952, %v1798
      %v1969 = vsel %vm1937, %v1953, %v1805
      %v1970 = vsel %vm1938, %v1954, %v1812
      %v1971 = vsel %vm1939, %v1955, %v1819
      %v1972 = vsel %vm1940, %v1956, %v1826
      %v1973 = vsel %vm1941, %v1957, %v1833
      %v1974 = vsel %vm1942, %v1958, %v1840
      %v1975 = vsel %vm1943, %v1959, %v1847
      %v1976 = vsel %vm1944, %v1960, %v1854
      %v1977 = vsel %vm1945, %v1961, %v1861
      %v1978 = vsel %vm1946, %v1962, %v1868
      %v1979 = vsel %vm1947, %v1963, %v1875
      %v1980 = vsel %vm1948, %v1964, %v1882
      %v1981 = vsel %vm1949, %v1965, %v1889
      %v1982 = vsel %vm1950, %v1966, %v1896
      %v1983 = vsel %vm1951, %v1967, %v1903
      %vm1984 = vcmp.ge.s32.totalorder %v1968, 1
      %vm1985 = vcmp.ge.s32.totalorder %v1969, 1
      %vm1986 = vcmp.ge.s32.totalorder %v1970, 1
      %vm1987 = vcmp.ge.s32.totalorder %v1971, 1
      %vm1988 = vcmp.ge.s32.totalorder %v1972, 1
      %vm1989 = vcmp.ge.s32.totalorder %v1973, 1
      %vm1990 = vcmp.ge.s32.totalorder %v1974, 1
      %vm1991 = vcmp.ge.s32.totalorder %v1975, 1
      %vm1992 = vcmp.ge.s32.totalorder %v1976, 1
      %vm1993 = vcmp.ge.s32.totalorder %v1977, 1
      %vm1994 = vcmp.ge.s32.totalorder %v1978, 1
      %vm1995 = vcmp.ge.s32.totalorder %v1979, 1
      %vm1996 = vcmp.ge.s32.totalorder %v1980, 1
      %vm1997 = vcmp.ge.s32.totalorder %v1981, 1
      %vm1998 = vcmp.ge.s32.totalorder %v1982, 1
      %vm1999 = vcmp.ge.s32.totalorder %v1983, 1
      %v2000 = vsel %vm1984, 1, 0
      %v2001 = vsel %vm1985, 1, 0
      %v2002 = vsel %vm1986, 1, 0
      %v2003 = vsel %vm1987, 1, 0
      %v2004 = vsel %vm1988, 1, 0
      %v2005 = vsel %vm1989, 1, 0
      %v2006 = vsel %vm1990, 1, 0
      %v2007 = vsel %vm1991, 1, 0
      %v2008 = vsel %vm1992, 1, 0
      %v2009 = vsel %vm1993, 1, 0
      %v2010 = vsel %vm1994, 1, 0
      %v2011 = vsel %vm1995, 1, 0
      %v2012 = vsel %vm1996, 1, 0
      %v2013 = vsel %vm1997, 1, 0
      %v2014 = vsel %vm1998, 1, 0
      %v2015 = vsel %vm1999, 1, 0
      %v2016 = vcvt.s32.f32 %v2000
      %v2017 = vcvt.s32.f32 %v2001
      %v2018 = vcvt.s32.f32 %v2002
      %v2019 = vcvt.s32.f32 %v2003
      %v2020 = vcvt.s32.f32 %v2004
      %v2021 = vcvt.s32.f32 %v2005
      %v2022 = vcvt.s32.f32 %v2006
      %v2023 = vcvt.s32.f32 %v2007
      %v2024 = vcvt.s32.f32 %v2008
      %v2025 = vcvt.s32.f32 %v2009
      %v2026 = vcvt.s32.f32 %v2010
      %v2027 = vcvt.s32.f32 %v2011
      %v2028 = vcvt.s32.f32 %v2012
      %v2029 = vcvt.s32.f32 %v2013
      %v2030 = vcvt.s32.f32 %v2014
      %v2031 = vcvt.s32.f32 %v2015
      %vm2032 = vcmp.lt.s32.totalorder %v1968, 15
      %vm2033 = vcmp.lt.s32.totalorder %v1969, 15
      %vm2034 = vcmp.lt.s32.totalorder %v1970, 15
      %vm2035 = vcmp.lt.s32.totalorder %v1971, 15
      %vm2036 = vcmp.lt.s32.totalorder %v1972, 15
      %vm2037 = vcmp.lt.s32.totalorder %v1973, 15
      %vm2038 = vcmp.lt.s32.totalorder %v1974, 15
      %vm2039 = vcmp.lt.s32.totalorder %v1975, 15
      %vm2040 = vcmp.lt.s32.totalorder %v1976, 15
      %vm2041 = vcmp.lt.s32.totalorder %v1977, 15
      %vm2042 = vcmp.lt.s32.totalorder %v1978, 15
      %vm2043 = vcmp.lt.s32.totalorder %v1979, 15
      %vm2044 = vcmp.lt.s32.totalorder %v1980, 15
      %vm2045 = vcmp.lt.s32.totalorder %v1981, 15
      %vm2046 = vcmp.lt.s32.totalorder %v1982, 15
      %vm2047 = vcmp.lt.s32.totalorder %v1983, 15
      %v2048 = vsel %vm2032, 1, 0
      %v2049 = vsel %vm2033, 1, 0
      %v2050 = vsel %vm2034, 1, 0
      %v2051 = vsel %vm2035, 1, 0
      %v2052 = vsel %vm2036, 1, 0
      %v2053 = vsel %vm2037, 1, 0
      %v2054 = vsel %vm2038, 1, 0
      %v2055 = vsel %vm2039, 1, 0
      %v2056 = vsel %vm2040, 1, 0
      %v2057 = vsel %vm2041, 1, 0
      %v2058 = vsel %vm2042, 1, 0
      %v2059 = vsel %vm2043, 1, 0
      %v2060 = vsel %vm2044, 1, 0
      %v2061 = vsel %vm2045, 1, 0
      %v2062 = vsel %vm2046, 1, 0
      %v2063 = vsel %vm2047, 1, 0
      %v2064 = vcvt.s32.f32 %v2048
      %v2065 = vcvt.s32.f32 %v2049
      %v2066 = vcvt.s32.f32 %v2050
      %v2067 = vcvt.s32.f32 %v2051
      %v2068 = vcvt.s32.f32 %v2052
      %v2069 = vcvt.s32.f32 %v2053
      %v2070 = vcvt.s32.f32 %v2054
      %v2071 = vcvt.s32.f32 %v2055
      %v2072 = vcvt.s32.f32 %v2056
      %v2073 = vcvt.s32.f32 %v2057
      %v2074 = vcvt.s32.f32 %v2058
      %v2075 = vcvt.s32.f32 %v2059
      %v2076 = vcvt.s32.f32 %v2060
      %v2077 = vcvt.s32.f32 %v2061
      %v2078 = vcvt.s32.f32 %v2062
      %v2079 = vcvt.s32.f32 %v2063
      %v2080 = vrot.slane %v1212, 7
      %v2081 = vrot.slane %v1216, 7
      %v2082 = vrot.slane %v1222, 7
      %v2083 = vrot.slane %v1226, 7
      %v2084 = vrot.slane %v1232, 7
      %v2085 = vrot.slane %v1236, 7
      %v2086 = vrot.slane %v1242, 7
      %v2087 = vrot.slane %v1246, 7
      %v2088 = vrot.slane %v1252, 7
      %v2089 = vrot.slane %v1256, 7
      %v2090 = vrot.slane %v1262, 7
      %v2091 = vrot.slane %v1266, 7
      %v2092 = vrot.slane %v1272, 7
      %v2093 = vrot.slane %v1276, 7
      %v2094 = vrot.slane %v1282, 7
      %v2095 = vrot.slane %v1286, 7
      %v2096 = vrot.slane %v1300, 7
      %vm2097 = vcmp.lt.s32.totalorder %v558, 1
      %v2098 = vsel %vm2097, %v2094, %v2095
      %v2099 = vsel %vm2097, %v2093, %v2094
      %v2100 = vsel %vm2097, %v2092, %v2093
      %v2101 = vsel %vm2097, %v2091, %v2092
      %v2102 = vsel %vm2097, %v2090, %v2091
      %v2103 = vsel %vm2097, %v2089, %v2090
      %v2104 = vsel %vm2097, %v2088, %v2089
      %v2105 = vsel %vm2097, %v2087, %v2088
      %v2106 = vsel %vm2097, %v2086, %v2087
      %v2107 = vsel %vm2097, %v2085, %v2086
      %v2108 = vsel %vm2097, %v2084, %v2085
      %v2109 = vsel %vm2097, %v2083, %v2084
      %v2110 = vsel %vm2097, %v2082, %v2083
      %v2111 = vsel %vm2097, %v2081, %v2082
      %v2112 = vsel %vm2097, %v2080, %v2081
      %v2113 = vsel %vm2097, %v2096, %v2080
      %v2114 = vmul.f32 %v2113, %v2016
      %v2115 = vmul.f32 %v2112, %v2017
      %v2116 = vmul.f32 %v2111, %v2018
      %v2117 = vmul.f32 %v2110, %v2019
      %v2118 = vmul.f32 %v2109, %v2020
      %v2119 = vmul.f32 %v2108, %v2021
      %v2120 = vmul.f32 %v2107, %v2022
      %v2121 = vmul.f32 %v2106, %v2023
      %v2122 = vmul.f32 %v2105, %v2024
      %v2123 = vmul.f32 %v2104, %v2025
      %v2124 = vmul.f32 %v2103, %v2026
      %v2125 = vmul.f32 %v2102, %v2027
      %v2126 = vmul.f32 %v2101, %v2028
      %v2127 = vmul.f32 %v2100, %v2029
      %v2128 = vmul.f32 %v2099, %v2030
      %v2129 = vmul.f32 %v2098, %v2031
      %v2130 = vadd.f32 %v2114, 0.0
      %v2131 = vadd.f32 %v2115, 0.0
      %v2132 = vadd.f32 %v2116, 0.0
      %v2133 = vadd.f32 %v2117, 0.0
      %v2134 = vadd.f32 %v2118, 0.0
      %v2135 = vadd.f32 %v2119, 0.0
      %v2136 = vadd.f32 %v2120, 0.0
      %v2137 = vadd.f32 %v2121, 0.0
      %v2138 = vadd.f32 %v2122, 0.0
      %v2139 = vadd.f32 %v2123, 0.0
      %v2140 = vadd.f32 %v2124, 0.0
      %v2141 = vadd.f32 %v2125, 0.0
      %v2142 = vadd.f32 %v2126, 0.0
      %v2143 = vadd.f32 %v2127, 0.0
      %v2144 = vadd.f32 %v2128, 0.0
      %v2145 = vadd.f32 %v2129, 0.0
      %v2146 = vadd.f32 %v2130, %v1214
      %v2147 = vadd.f32 %v2131, %v1218
      %v2148 = vadd.f32 %v2132, %v1224
      %v2149 = vadd.f32 %v2133, %v1228
      %v2150 = vadd.f32 %v2134, %v1234
      %v2151 = vadd.f32 %v2135, %v1238
      %v2152 = vadd.f32 %v2136, %v1244
      %v2153 = vadd.f32 %v2137, %v1248
      %v2154 = vadd.f32 %v2138, %v1254
      %v2155 = vadd.f32 %v2139, %v1258
      %v2156 = vadd.f32 %v2140, %v1264
      %v2157 = vadd.f32 %v2141, %v1268
      %v2158 = vadd.f32 %v2142, %v1274
      %v2159 = vadd.f32 %v2143, %v1278
      %v2160 = vadd.f32 %v2144, %v1284
      %v2161 = vadd.f32 %v2145, %v1288
      %v2162 = vrot.slane %v1338, 1
      %v2163 = vrot.slane %v1341, 1
      %v2164 = vrot.slane %v1347, 1
      %v2165 = vrot.slane %v1351, 1
      %v2166 = vrot.slane %v1357, 1
      %v2167 = vrot.slane %v1361, 1
      %v2168 = vrot.slane %v1367, 1
      %v2169 = vrot.slane %v1371, 1
      %v2170 = vrot.slane %v1377, 1
      %v2171 = vrot.slane %v1381, 1
      %v2172 = vrot.slane %v1387, 1
      %v2173 = vrot.slane %v1391, 1
      %v2174 = vrot.slane %v1397, 1
      %v2175 = vrot.slane %v1401, 1
      %v2176 = vrot.slane %v1407, 1
      %v2177 = vrot.slane %v1411, 1
      %v2178 = vrot.slane %v1417, 1
      %vm2179 = vcmp.lt.s32.totalorder %v558, 7
      %v2180 = vsel %vm2179, %v2177, %v2178
      %v2181 = vsel %vm2179, %v2176, %v2177
      %v2182 = vsel %vm2179, %v2175, %v2176
      %v2183 = vsel %vm2179, %v2174, %v2175
      %v2184 = vsel %vm2179, %v2173, %v2174
      %v2185 = vsel %vm2179, %v2172, %v2173
      %v2186 = vsel %vm2179, %v2171, %v2172
      %v2187 = vsel %vm2179, %v2170, %v2171
      %v2188 = vsel %vm2179, %v2169, %v2170
      %v2189 = vsel %vm2179, %v2168, %v2169
      %v2190 = vsel %vm2179, %v2167, %v2168
      %v2191 = vsel %vm2179, %v2166, %v2167
      %v2192 = vsel %vm2179, %v2165, %v2166
      %v2193 = vsel %vm2179, %v2164, %v2165
      %v2194 = vsel %vm2179, %v2163, %v2164
      %v2195 = vsel %vm2179, %v2162, %v2163
      %v2196 = vmul.f32 %v2195, %v2064
      %v2197 = vmul.f32 %v2194, %v2065
      %v2198 = vmul.f32 %v2193, %v2066
      %v2199 = vmul.f32 %v2192, %v2067
      %v2200 = vmul.f32 %v2191, %v2068
      %v2201 = vmul.f32 %v2190, %v2069
      %v2202 = vmul.f32 %v2189, %v2070
      %v2203 = vmul.f32 %v2188, %v2071
      %v2204 = vmul.f32 %v2187, %v2072
      %v2205 = vmul.f32 %v2186, %v2073
      %v2206 = vmul.f32 %v2185, %v2074
      %v2207 = vmul.f32 %v2184, %v2075
      %v2208 = vmul.f32 %v2183, %v2076
      %v2209 = vmul.f32 %v2182, %v2077
      %v2210 = vmul.f32 %v2181, %v2078
      %v2211 = vmul.f32 %v2180, %v2079
      %v2212 = vadd.f32 %v2146, %v2196
      %v2213 = vadd.f32 %v2147, %v2197
      %v2214 = vadd.f32 %v2148, %v2198
      %v2215 = vadd.f32 %v2149, %v2199
      %v2216 = vadd.f32 %v2150, %v2200
      %v2217 = vadd.f32 %v2151, %v2201
      %v2218 = vadd.f32 %v2152, %v2202
      %v2219 = vadd.f32 %v2153, %v2203
      %v2220 = vadd.f32 %v2154, %v2204
      %v2221 = vadd.f32 %v2155, %v2205
      %v2222 = vadd.f32 %v2156, %v2206
      %v2223 = vadd.f32 %v2157, %v2207
      %v2224 = vadd.f32 %v2158, %v2208
      %v2225 = vadd.f32 %v2159, %v2209
      %v2226 = vadd.f32 %v2160, %v2210
      %v2227 = vadd.f32 %v2161, %v2211
      %v2228 = vrot.slane %v1343, 7
      %v2229 = vrot.slane %v1349, 7
      %v2230 = vrot.slane %v1353, 7
      %v2231 = vrot.slane %v1359, 7
      %v2232 = vrot.slane %v1363, 7
      %v2233 = vrot.slane %v1369, 7
      %v2234 = vrot.slane %v1373, 7
      %v2235 = vrot.slane %v1379, 7
      %v2236 = vrot.slane %v1383, 7
      %v2237 = vrot.slane %v1389, 7
      %v2238 = vrot.slane %v1393, 7
      %v2239 = vrot.slane %v1399, 7
      %v2240 = vrot.slane %v1403, 7
      %v2241 = vrot.slane %v1409, 7
      %v2242 = vrot.slane %v1413, 7
      %v2243 = vrot.slane %v1419, 7
      %v2244 = vrot.slane %v1422, 7
      %v2245 = vsel %vm2097, %v2243, %v2244
      %v2246 = vsel %vm2097, %v2242, %v2243
      %v2247 = vsel %vm2097, %v2241, %v2242
      %v2248 = vsel %vm2097, %v2240, %v2241
      %v2249 = vsel %vm2097, %v2239, %v2240
      %v2250 = vsel %vm2097, %v2238, %v2239
      %v2251 = vsel %vm2097, %v2237, %v2238
      %v2252 = vsel %vm2097, %v2236, %v2237
      %v2253 = vsel %vm2097, %v2235, %v2236
      %v2254 = vsel %vm2097, %v2234, %v2235
      %v2255 = vsel %vm2097, %v2233, %v2234
      %v2256 = vsel %vm2097, %v2232, %v2233
      %v2257 = vsel %vm2097, %v2231, %v2232
      %v2258 = vsel %vm2097, %v2230, %v2231
      %v2259 = vsel %vm2097, %v2229, %v2230
      %v2260 = vsel %vm2097, %v2228, %v2229
      %v2261 = vmul.f32 %v2260, %v2016
      %v2262 = vmul.f32 %v2259, %v2017
      %v2263 = vmul.f32 %v2258, %v2018
      %v2264 = vmul.f32 %v2257, %v2019
      %v2265 = vmul.f32 %v2256, %v2020
      %v2266 = vmul.f32 %v2255, %v2021
      %v2267 = vmul.f32 %v2254, %v2022
      %v2268 = vmul.f32 %v2253, %v2023
      %v2269 = vmul.f32 %v2252, %v2024
      %v2270 = vmul.f32 %v2251, %v2025
      %v2271 = vmul.f32 %v2250, %v2026
      %v2272 = vmul.f32 %v2249, %v2027
      %v2273 = vmul.f32 %v2248, %v2028
      %v2274 = vmul.f32 %v2247, %v2029
      %v2275 = vmul.f32 %v2246, %v2030
      %v2276 = vmul.f32 %v2245, %v2031
      %v2277 = vadd.f32 %v2212, %v2261
      %v2278 = vadd.f32 %v2213, %v2262
      %v2279 = vadd.f32 %v2214, %v2263
      %v2280 = vadd.f32 %v2215, %v2264
      %v2281 = vadd.f32 %v2216, %v2265
      %v2282 = vadd.f32 %v2217, %v2266
      %v2283 = vadd.f32 %v2218, %v2267
      %v2284 = vadd.f32 %v2219, %v2268
      %v2285 = vadd.f32 %v2220, %v2269
      %v2286 = vadd.f32 %v2221, %v2270
      %v2287 = vadd.f32 %v2222, %v2271
      %v2288 = vadd.f32 %v2223, %v2272
      %v2289 = vadd.f32 %v2224, %v2273
      %v2290 = vadd.f32 %v2225, %v2274
      %v2291 = vadd.f32 %v2226, %v2275
      %v2292 = vadd.f32 %v2227, %v2276
      %v2293 = vadd.f32 %v2277, %v1471
      %v2294 = vadd.f32 %v2278, %v1475
      %v2295 = vadd.f32 %v2279, %v1481
      %v2296 = vadd.f32 %v2280, %v1485
      %v2297 = vadd.f32 %v2281, %v1491
      %v2298 = vadd.f32 %v2282, %v1495
      %v2299 = vadd.f32 %v2283, %v1501
      %v2300 = vadd.f32 %v2284, %v1505
      %v2301 = vadd.f32 %v2285, %v1511
      %v2302 = vadd.f32 %v2286, %v1515
      %v2303 = vadd.f32 %v2287, %v1521
      %v2304 = vadd.f32 %v2288, %v1525
      %v2305 = vadd.f32 %v2289, %v1531
      %v2306 = vadd.f32 %v2290, %v1535
      %v2307 = vadd.f32 %v2291, %v1541
      %v2308 = vadd.f32 %v2292, %v1545
      %v2309 = vrot.slane %v1473, 1
      %v2310 = vrot.slane %v1477, 1
      %v2311 = vrot.slane %v1483, 1
      %v2312 = vrot.slane %v1487, 1
      %v2313 = vrot.slane %v1493, 1
      %v2314 = vrot.slane %v1497, 1
      %v2315 = vrot.slane %v1503, 1
      %v2316 = vrot.slane %v1507, 1
      %v2317 = vrot.slane %v1513, 1
      %v2318 = vrot.slane %v1517, 1
      %v2319 = vrot.slane %v1523, 1
      %v2320 = vrot.slane %v1527, 1
      %v2321 = vrot.slane %v1533, 1
      %v2322 = vrot.slane %v1537, 1
      %v2323 = vrot.slane %v1543, 1
      %v2324 = vrot.slane %v1547, 1
      %v2325 = vrot.slane %v1552, 1
      %v2326 = vsel %vm2179, %v2324, %v2325
      %v2327 = vsel %vm2179, %v2323, %v2324
      %v2328 = vsel %vm2179, %v2322, %v2323
      %v2329 = vsel %vm2179, %v2321, %v2322
      %v2330 = vsel %vm2179, %v2320, %v2321
      %v2331 = vsel %vm2179, %v2319, %v2320
      %v2332 = vsel %vm2179, %v2318, %v2319
      %v2333 = vsel %vm2179, %v2317, %v2318
      %v2334 = vsel %vm2179, %v2316, %v2317
      %v2335 = vsel %vm2179, %v2315, %v2316
      %v2336 = vsel %vm2179, %v2314, %v2315
      %v2337 = vsel %vm2179, %v2313, %v2314
      %v2338 = vsel %vm2179, %v2312, %v2313
      %v2339 = vsel %vm2179, %v2311, %v2312
      %v2340 = vsel %vm2179, %v2310, %v2311
      %v2341 = vsel %vm2179, %v2309, %v2310
      %v2342 = vmul.f32 %v2341, %v2064
      %v2343 = vmul.f32 %v2340, %v2065
      %v2344 = vmul.f32 %v2339, %v2066
      %v2345 = vmul.f32 %v2338, %v2067
      %v2346 = vmul.f32 %v2337, %v2068
      %v2347 = vmul.f32 %v2336, %v2069
      %v2348 = vmul.f32 %v2335, %v2070
      %v2349 = vmul.f32 %v2334, %v2071
      %v2350 = vmul.f32 %v2333, %v2072
      %v2351 = vmul.f32 %v2332, %v2073
      %v2352 = vmul.f32 %v2331, %v2074
      %v2353 = vmul.f32 %v2330, %v2075
      %v2354 = vmul.f32 %v2329, %v2076
      %v2355 = vmul.f32 %v2328, %v2077
      %v2356 = vmul.f32 %v2327, %v2078
      %v2357 = vmul.f32 %v2326, %v2079
      %v2358 = vadd.f32 %v2293, %v2342
      %v2359 = vadd.f32 %v2294, %v2343
      %v2360 = vadd.f32 %v2295, %v2344
      %v2361 = vadd.f32 %v2296, %v2345
      %v2362 = vadd.f32 %v2297, %v2346
      %v2363 = vadd.f32 %v2298, %v2347
      %v2364 = vadd.f32 %v2299, %v2348
      %v2365 = vadd.f32 %v2300, %v2349
      %v2366 = vadd.f32 %v2301, %v2350
      %v2367 = vadd.f32 %v2302, %v2351
      %v2368 = vadd.f32 %v2303, %v2352
      %v2369 = vadd.f32 %v2304, %v2353
      %v2370 = vadd.f32 %v2305, %v2354
      %v2371 = vadd.f32 %v2306, %v2355
      %v2372 = vadd.f32 %v2307, %v2356
      %v2373 = vadd.f32 %v2308, %v2357
      %v2374 = vrot.slane %v1599, 7
      %v2375 = vrot.slane %v1604, 7
      %v2376 = vrot.slane %v1608, 7
      %v2377 = vrot.slane %v1614, 7
      %v2378 = vrot.slane %v1618, 7
      %v2379 = vrot.slane %v1624, 7
      %v2380 = vrot.slane %v1628, 7
      %v2381 = vrot.slane %v1634, 7
      %v2382 = vrot.slane %v1638, 7
      %v2383 = vrot.slane %v1644, 7
      %v2384 = vrot.slane %v1648, 7
      %v2385 = vrot.slane %v1654, 7
      %v2386 = vrot.slane %v1658, 7
      %v2387 = vrot.slane %v1664, 7
      %v2388 = vrot.slane %v1668, 7
      %v2389 = vrot.slane %v1674, 7
      %v2390 = vrot.slane %v1678, 7
      %v2391 = vsel %vm2097, %v2389, %v2390
      %v2392 = vsel %vm2097, %v2388, %v2389
      %v2393 = vsel %vm2097, %v2387, %v2388
      %v2394 = vsel %vm2097, %v2386, %v2387
      %v2395 = vsel %vm2097, %v2385, %v2386
      %v2396 = vsel %vm2097, %v2384, %v2385
      %v2397 = vsel %vm2097, %v2383, %v2384
      %v2398 = vsel %vm2097, %v2382, %v2383
      %v2399 = vsel %vm2097, %v2381, %v2382
      %v2400 = vsel %vm2097, %v2380, %v2381
      %v2401 = vsel %vm2097, %v2379, %v2380
      %v2402 = vsel %vm2097, %v2378, %v2379
      %v2403 = vsel %vm2097, %v2377, %v2378
      %v2404 = vsel %vm2097, %v2376, %v2377
      %v2405 = vsel %vm2097, %v2375, %v2376
      %v2406 = vsel %vm2097, %v2374, %v2375
      %v2407 = vmul.f32 %v2406, %v2016
      %v2408 = vmul.f32 %v2405, %v2017
      %v2409 = vmul.f32 %v2404, %v2018
      %v2410 = vmul.f32 %v2403, %v2019
      %v2411 = vmul.f32 %v2402, %v2020
      %v2412 = vmul.f32 %v2401, %v2021
      %v2413 = vmul.f32 %v2400, %v2022
      %v2414 = vmul.f32 %v2399, %v2023
      %v2415 = vmul.f32 %v2398, %v2024
      %v2416 = vmul.f32 %v2397, %v2025
      %v2417 = vmul.f32 %v2396, %v2026
      %v2418 = vmul.f32 %v2395, %v2027
      %v2419 = vmul.f32 %v2394, %v2028
      %v2420 = vmul.f32 %v2393, %v2029
      %v2421 = vmul.f32 %v2392, %v2030
      %v2422 = vmul.f32 %v2391, %v2031
      %v2423 = vadd.f32 %v2358, %v2407
      %v2424 = vadd.f32 %v2359, %v2408
      %v2425 = vadd.f32 %v2360, %v2409
      %v2426 = vadd.f32 %v2361, %v2410
      %v2427 = vadd.f32 %v2362, %v2411
      %v2428 = vadd.f32 %v2363, %v2412
      %v2429 = vadd.f32 %v2364, %v2413
      %v2430 = vadd.f32 %v2365, %v2414
      %v2431 = vadd.f32 %v2366, %v2415
      %v2432 = vadd.f32 %v2367, %v2416
      %v2433 = vadd.f32 %v2368, %v2417
      %v2434 = vadd.f32 %v2369, %v2418
      %v2435 = vadd.f32 %v2370, %v2419
      %v2436 = vadd.f32 %v2371, %v2420
      %v2437 = vadd.f32 %v2372, %v2421
      %v2438 = vadd.f32 %v2373, %v2422
      %v2439 = vadd.f32 %v2423, %v1606
      %v2440 = vadd.f32 %v2424, %v1610
      %v2441 = vadd.f32 %v2425, %v1616
      %v2442 = vadd.f32 %v2426, %v1620
      %v2443 = vadd.f32 %v2427, %v1626
      %v2444 = vadd.f32 %v2428, %v1630
      %v2445 = vadd.f32 %v2429, %v1636
      %v2446 = vadd.f32 %v2430, %v1640
      %v2447 = vadd.f32 %v2431, %v1646
      %v2448 = vadd.f32 %v2432, %v1650
      %v2449 = vadd.f32 %v2433, %v1656
      %v2450 = vadd.f32 %v2434, %v1660
      %v2451 = vadd.f32 %v2435, %v1666
      %v2452 = vadd.f32 %v2436, %v1670
      %v2453 = vadd.f32 %v2437, %v1676
      %v2454 = vadd.f32 %v2438, %v1680
      %v2455 = vrot.slane %v1717, 1
      %v2456 = vrot.slane %v1730, 1
      %v2457 = vrot.slane %v1733, 1
      %v2458 = vrot.slane %v1738, 1
      %v2459 = vrot.slane %v1741, 1
      %v2460 = vrot.slane %v1746, 1
      %v2461 = vrot.slane %v1749, 1
      %v2462 = vrot.slane %v1754, 1
      %v2463 = vrot.slane %v1757, 1
      %v2464 = vrot.slane %v1762, 1
      %v2465 = vrot.slane %v1765, 1
      %v2466 = vrot.slane %v1770, 1
      %v2467 = vrot.slane %v1773, 1
      %v2468 = vrot.slane %v1778, 1
      %v2469 = vrot.slane %v1781, 1
      %v2470 = vrot.slane %v1786, 1
      %v2471 = vrot.slane %v1789, 1
      %v2472 = vsel %vm2179, %v2470, %v2471
      %v2473 = vsel %vm2179, %v2469, %v2470
      %v2474 = vsel %vm2179, %v2468, %v2469
      %v2475 = vsel %vm2179, %v2467, %v2468
      %v2476 = vsel %vm2179, %v2466, %v2467
      %v2477 = vsel %vm2179, %v2465, %v2466
      %v2478 = vsel %vm2179, %v2464, %v2465
      %v2479 = vsel %vm2179, %v2463, %v2464
      %v2480 = vsel %vm2179, %v2462, %v2463
      %v2481 = vsel %vm2179, %v2461, %v2462
      %v2482 = vsel %vm2179, %v2460, %v2461
      %v2483 = vsel %vm2179, %v2459, %v2460
      %v2484 = vsel %vm2179, %v2458, %v2459
      %v2485 = vsel %vm2179, %v2457, %v2458
      %v2486 = vsel %vm2179, %v2456, %v2457
      %v2487 = vsel %vm2179, %v2471, %v2455
      %v2488 = vmul.f32 %v2486, %v2064
      %v2489 = vmul.f32 %v2485, %v2065
      %v2490 = vmul.f32 %v2484, %v2066
      %v2491 = vmul.f32 %v2483, %v2067
      %v2492 = vmul.f32 %v2482, %v2068
      %v2493 = vmul.f32 %v2481, %v2069
      %v2494 = vmul.f32 %v2480, %v2070
      %v2495 = vmul.f32 %v2479, %v2071
      %v2496 = vmul.f32 %v2478, %v2072
      %v2497 = vmul.f32 %v2477, %v2073
      %v2498 = vmul.f32 %v2476, %v2074
      %v2499 = vmul.f32 %v2475, %v2075
      %v2500 = vmul.f32 %v2474, %v2076
      %v2501 = vmul.f32 %v2473, %v2077
      %v2502 = vmul.f32 %v2472, %v2078
      %v2503 = vmul.f32 %v2487, %v2079
      %v2504 = vadd.f32 %v2439, %v2488
      %v2505 = vadd.f32 %v2440, %v2489
      %v2506 = vadd.f32 %v2441, %v2490
      %v2507 = vadd.f32 %v2442, %v2491
      %v2508 = vadd.f32 %v2443, %v2492
      %v2509 = vadd.f32 %v2444, %v2493
      %v2510 = vadd.f32 %v2445, %v2494
      %v2511 = vadd.f32 %v2446, %v2495
      %v2512 = vadd.f32 %v2447, %v2496
      %v2513 = vadd.f32 %v2448, %v2497
      %v2514 = vadd.f32 %v2449, %v2498
      %v2515 = vadd.f32 %v2450, %v2499
      %v2516 = vadd.f32 %v2451, %v2500
      %v2517 = vadd.f32 %v2452, %v2501
      %v2518 = vadd.f32 %v2453, %v2502
      %v2519 = vadd.f32 %v2454, %v2503
      %v2520 = vld [vmem:[%s5] sm:$0x1]
      %v2522 = vlaneseq
      %v2523 = vshrl.u32 %v2522, 7
      %v2524 = vsub.s32 0, %v2523
      %v2525 = vrot.slane %v2520, %v2524
      %v2527 = vadd.f32 %v2504, %v2525
      %v2528 = vadd.f32 %v2505, %v2525
      %v2529 = vadd.f32 %v2506, %v2525
      %v2530 = vadd.f32 %v2507, %v2525
      %v2531 = vadd.f32 %v2508, %v2525
      %v2532 = vadd.f32 %v2509, %v2525
      %v2533 = vadd.f32 %v2510, %v2525
      %v2534 = vadd.f32 %v2511, %v2525
      %v2535 = vadd.f32 %v2512, %v2525
      %v2536 = vadd.f32 %v2513, %v2525
      %v2537 = vadd.f32 %v2514, %v2525
      %v2538 = vadd.f32 %v2515, %v2525
      %v2539 = vadd.f32 %v2516, %v2525
      %v2540 = vadd.f32 %v2517, %v2525
      %v2541 = vadd.f32 %v2518, %v2525
      %v2542 = vadd.f32 %v2519, %v2525
      %v2543 = vmax.f32 %v2527, 0.0
      %v2544 = vmax.f32 %v2528, 0.0
      %v2545 = vmax.f32 %v2529, 0.0
      %v2546 = vmax.f32 %v2530, 0.0
      %v2547 = vmax.f32 %v2531, 0.0
      %v2548 = vmax.f32 %v2532, 0.0
      %v2549 = vmax.f32 %v2533, 0.0
      %v2550 = vmax.f32 %v2534, 0.0
      %v2551 = vmax.f32 %v2535, 0.0
      %v2552 = vmax.f32 %v2536, 0.0
      %v2553 = vmax.f32 %v2537, 0.0
      %v2554 = vmax.f32 %v2538, 0.0
      %v2555 = vmax.f32 %v2539, 0.0
      %v2556 = vmax.f32 %v2540, 0.0
      %v2557 = vmax.f32 %v2541, 0.0
      %v2558 = vmax.f32 %v2542, 0.0
      %v2559 = vpack.c.bf16 %v2544, %v2543
      %v2560 = vpack.c.bf16 %v2546, %v2545
      %v2561 = vpack.c.bf16 %v2548, %v2547
      %v2562 = vpack.c.bf16 %v2550, %v2549
      %v2563 = vpack.c.bf16 %v2552, %v2551
      %v2564 = vpack.c.bf16 %v2554, %v2553
      %v2565 = vpack.c.bf16 %v2556, %v2555
      %v2566 = vpack.c.bf16 %v2558, %v2557
      %v2567 = vld [vmem:[%s3] sm:$0xf]
      %v2568 = vld [vmem:[%s3 + $0x4] sm:$0xf]
      %v2569 = vld [vmem:[%s3 + $0x8] sm:$0xf]
      %v2570 = vld [vmem:[%s3 + $0xc] sm:$0xf]
      %v2571 = vld [vmem:[%s3 + $0x10] sm:$0xf]
      %v2572 = vld [vmem:[%s3 + $0x14] sm:$0xf]
      %v2573 = vld [vmem:[%s3 + $0x18] sm:$0xf]
      %v2574 = vld [vmem:[%s3 + $0x1c] sm:$0xf]
      %v2575 = vld [vmem:[%s3 + $0x20] sm:$0xf]
      %v2576 = vld [vmem:[%s3 + $0x24] sm:$0xf]
      %v2577 = vld [vmem:[%s3 + $0x28] sm:$0xf]
      %v2578 = vld [vmem:[%s3 + $0x2c] sm:$0xf]
      %v2579 = vld [vmem:[%s3 + $0x30] sm:$0xf]
      %v2580 = vld [vmem:[%s3 + $0x34] sm:$0xf]
      %v2581 = vld [vmem:[%s3 + $0x38] sm:$0xf]
      %v2582 = vld [vmem:[%s3 + $0x3c] sm:$0xf]
      %s2583 = sadd.s32 %s303, 16
      %s2584 = sshra.s32 %s2583, 3
      %s2585 = sand.u32 %s2583, 7
      %s2586 = smul.addr %s2584, 4
      %s2587 = scalar_lea.vmem %s291, %s2586
      %v2588 = vld [vmem:[%s2587] sm:$0xf]
      %v2589 = vld [vmem:[%s2587 + $0x4] sm:$0xf]
      %v2590 = vld [vmem:[%s2587 + $0x8] sm:$0xf]
      %v2591 = vld [vmem:[%s2587 + $0xc] sm:$0xf]
      %v2592 = vld [vmem:[%s2587 + $0x10] sm:$0xf]
      %v2593 = vld [vmem:[%s2587 + $0x14] sm:$0xf]
      %v2594 = vld [vmem:[%s2587 + $0x18] sm:$0xf]
      %v2595 = vld [vmem:[%s2587 + $0x1c] sm:$0xf]
      %v2596 = vld [vmem:[%s2587 + $0x20] sm:$0xf]
      %v2597 = vld [vmem:[%s2587 + $0x24] sm:$0xf]
      %v2598 = vld [vmem:[%s2587 + $0x28] sm:$0xf]
      %v2599 = vld [vmem:[%s2587 + $0x2c] sm:$0xf]
      %v2600 = vld [vmem:[%s2587 + $0x30] sm:$0xf]
      %v2601 = vld [vmem:[%s2587 + $0x34] sm:$0xf]
      %v2602 = vld [vmem:[%s2587 + $0x38] sm:$0xf]
      %v2603 = vld [vmem:[%s2587 + $0x3c] sm:$0xf]
      %v2604 = vunpack.c.l.bf16 %v2588
      %v2605 = vunpack.c.l.bf16 %v2589
      %v2606 = vunpack.c.l.bf16 %v2590
      %v2607 = vunpack.c.l.bf16 %v2591
      %v2608 = vunpack.c.l.bf16 %v2592
      %v2609 = vunpack.c.l.bf16 %v2593
      %v2610 = vunpack.c.l.bf16 %v2594
      %v2611 = vunpack.c.l.bf16 %v2595
      %v2612 = vunpack.c.l.bf16 %v2596
      %v2613 = vunpack.c.l.bf16 %v2597
      %v2614 = vunpack.c.l.bf16 %v2598
      %v2615 = vunpack.c.l.bf16 %v2599
      %v2616 = vunpack.c.l.bf16 %v2600
      %v2617 = vunpack.c.l.bf16 %v2601
      %v2618 = vunpack.c.l.bf16 %v2602
      %v2619 = vunpack.c.l.bf16 %v2603
      %v2620 = vld [vmem:[%s6] sm:$0x1]
      %v2622 = vlaneseq
      %v2623 = vshrl.u32 %v2622, 7
      %v2624 = vsub.s32 0, %v2623
      %v2625 = vrot.slane %v2620, %v2624
      %v2643 = vunpack.c.l.b16 %v2567
      %v2644 = vunpack.c.l.b16 %v2568
      %v2645 = vunpack.c.l.b16 %v2569
      %v2646 = vunpack.c.l.b16 %v2570
      %v2647 = vunpack.c.l.b16 %v2571
      %v2648 = vunpack.c.l.b16 %v2572
      %v2649 = vunpack.c.l.b16 %v2573
      %v2650 = vunpack.c.l.b16 %v2574
      %v2651 = vunpack.c.l.b16 %v2575
      %v2652 = vunpack.c.l.b16 %v2576
      %v2653 = vunpack.c.l.b16 %v2577
      %v2654 = vunpack.c.l.b16 %v2578
      %v2655 = vunpack.c.l.b16 %v2579
      %v2656 = vunpack.c.l.b16 %v2580
      %v2657 = vunpack.c.l.b16 %v2581
      %v2658 = vunpack.c.l.b16 %v2582
      %v2659 = vpack.c.b16 %v2644, %v2643
      %v2660 = vpack.c.b16 %v2646, %v2645
      %v2661 = vpack.c.b16 %v2648, %v2647
      %v2662 = vpack.c.b16 %v2650, %v2649
      %v2663 = vpack.c.b16 %v2652, %v2651
      %v2664 = vpack.c.b16 %v2654, %v2653
      %v2665 = vpack.c.b16 %v2656, %v2655
      %v2666 = vpack.c.b16 %v2658, %v2657
      %2675 = vmatprep.subr.bf16.mxu0 0
      %2676 = vmatpush1.bf16.msra.mxu0 %v2666
      %2677 = vmatprep.subr.bf16.mxu0 0
      %2678 = vmatpush1.bf16.msra.mxu0 %v2665
      %2679 = vmatprep.subr.bf16.mxu0 0
      %2680 = vmatpush1.bf16.msra.mxu0 %v2664
      %2681 = vmatprep.subr.bf16.mxu0 0
      %2682 = vmatpush1.bf16.msra.mxu0 %v2663
      %2683 = vmatprep.subr.bf16.mxu0 0
      %2684 = vmatpush1.bf16.msra.mxu0 %v2662
      %2685 = vmatprep.subr.bf16.mxu0 0
      %2686 = vmatpush1.bf16.msra.mxu0 %v2661
      %2687 = vmatprep.subr.bf16.mxu0 0
      %2688 = vmatpush1.bf16.msra.mxu0 %v2660
      %2689 = vmatprep.subr.bf16.mxu0 0
      %2690 = vmatpush1.bf16.msra.mxu0 %v2659
      %2691 = vmatprep.subr.bf16.mxu0 0
      %2692 = vmatpush2.bf16.msra.mxu0 0
      %2693 = vmatprep.subr.bf16.mxu0 0
      %2694 = vmatpush2.bf16.msra.mxu0 0
      %2695 = vmatprep.subr.bf16.mxu0 0
      %2696 = vmatpush2.bf16.msra.mxu0 0
      %2697 = vmatprep.subr.bf16.mxu0 0
      %2698 = vmatpush2.bf16.msra.mxu0 0
      %2699 = vmatprep.subr.bf16.mxu0 0
      %2700 = vmatpush2.bf16.msra.mxu0 0
      %2701 = vmatprep.subr.bf16.mxu0 0
      %2702 = vmatpush2.bf16.msra.mxu0 0
      %2703 = vmatprep.subr.bf16.mxu0 0
      %2704 = vmatpush2.bf16.msra.mxu0 0
      %2705 = vmatprep.subr.bf16.mxu0 0
      %2706 = vmatpush2.bf16.msra.mxu0 0
      %2707 = vmatprep.mubr.bf16.mxu0 0
      %2708 = vmatmul.mubr.bf16.gmra.mxu0 %v2559
      %v2709 = vpop.f32.mrf.mxu0
      %v2710 = vadd.f32 %v2625, %v2709
      %v2711 = vpop.f32.mrf.mxu0
      %v2712 = vpop.f32.mrf.mxu0
      %v2713 = vadd.f32 %v2625, %v2712
      %v2714 = vpop.f32.mrf.mxu0
      %2715 = vmatprep.mubr.bf16.mxu0 0
      %2716 = vmatmul.mubr.bf16.gmra.mxu0 %v2560
      %v2717 = vpop.f32.mrf.mxu0
      %v2718 = vadd.f32 %v2625, %v2717
      %v2719 = vpop.f32.mrf.mxu0
      %v2720 = vpop.f32.mrf.mxu0
      %v2721 = vadd.f32 %v2625, %v2720
      %v2722 = vpop.f32.mrf.mxu0
      %2723 = vmatprep.mubr.bf16.mxu0 0
      %2724 = vmatmul.mubr.bf16.gmra.mxu0 %v2561
      %v2725 = vpop.f32.mrf.mxu0
      %v2726 = vadd.f32 %v2625, %v2725
      %v2727 = vpop.f32.mrf.mxu0
      %v2728 = vpop.f32.mrf.mxu0
      %v2729 = vadd.f32 %v2625, %v2728
      %v2730 = vpop.f32.mrf.mxu0
      %2731 = vmatprep.mubr.bf16.mxu0 0
      %2732 = vmatmul.mubr.bf16.gmra.mxu0 %v2562
      %v2733 = vpop.f32.mrf.mxu0
      %v2734 = vadd.f32 %v2625, %v2733
      %v2735 = vpop.f32.mrf.mxu0
      %v2736 = vpop.f32.mrf.mxu0
      %v2737 = vadd.f32 %v2625, %v2736
      %v2738 = vpop.f32.mrf.mxu0
      %2739 = vmatprep.mubr.bf16.mxu0 0
      %2740 = vmatmul.mubr.bf16.gmra.mxu0 %v2563
      %v2741 = vpop.f32.mrf.mxu0
      %v2742 = vadd.f32 %v2625, %v2741
      %v2743 = vpop.f32.mrf.mxu0
      %v2744 = vpop.f32.mrf.mxu0
      %v2745 = vadd.f32 %v2625, %v2744
      %v2746 = vpop.f32.mrf.mxu0
      %2747 = vmatprep.mubr.bf16.mxu0 0
      %2748 = vmatmul.mubr.bf16.gmra.mxu0 %v2564
      %v2749 = vpop.f32.mrf.mxu0
      %v2750 = vadd.f32 %v2625, %v2749
      %v2751 = vpop.f32.mrf.mxu0
      %v2752 = vpop.f32.mrf.mxu0
      %v2753 = vadd.f32 %v2625, %v2752
      %v2754 = vpop.f32.mrf.mxu0
      %2755 = vmatprep.mubr.bf16.mxu0 0
      %2756 = vmatmul.mubr.bf16.gmra.mxu0 %v2565
      %v2757 = vpop.f32.mrf.mxu0
      %v2758 = vadd.f32 %v2625, %v2757
      %v2759 = vpop.f32.mrf.mxu0
      %v2760 = vpop.f32.mrf.mxu0
      %v2761 = vadd.f32 %v2625, %v2760
      %v2762 = vpop.f32.mrf.mxu0
      %2763 = vmatprep.mubr.bf16.mxu0 0
      %2764 = vmatmul.mubr.bf16.gmra.mxu0 %v2566
      %v2765 = vpop.f32.mrf.mxu0
      %v2766 = vadd.f32 %v2625, %v2765
      %v2767 = vpop.f32.mrf.mxu0
      %v2768 = vpop.f32.mrf.mxu0
      %v2769 = vadd.f32 %v2625, %v2768
      %v2770 = vpop.f32.mrf.mxu0
      %2771 = vdwg.mxu0
      %v2772 = vadd.f32 %v2710, %v2604
      %v2773 = vadd.f32 %v2713, %v2605
      %v2774 = vadd.f32 %v2718, %v2606
      %v2775 = vadd.f32 %v2721, %v2607
      %v2776 = vadd.f32 %v2726, %v2608
      %v2777 = vadd.f32 %v2729, %v2609
      %v2778 = vadd.f32 %v2734, %v2610
      %v2779 = vadd.f32 %v2737, %v2611
      %v2780 = vadd.f32 %v2742, %v2612
      %v2781 = vadd.f32 %v2745, %v2613
      %v2782 = vadd.f32 %v2750, %v2614
      %v2783 = vadd.f32 %v2753, %v2615
      %v2784 = vadd.f32 %v2758, %v2616
      %v2785 = vadd.f32 %v2761, %v2617
      %v2786 = vadd.f32 %v2766, %v2618
      %v2787 = vadd.f32 %v2769, %v2619
      %v2788 = vmax.f32 %v2772, 0.0
      %v2789 = vmax.f32 %v2773, 0.0
      %v2790 = vmax.f32 %v2774, 0.0
      %v2791 = vmax.f32 %v2775, 0.0
      %v2792 = vmax.f32 %v2776, 0.0
      %v2793 = vmax.f32 %v2777, 0.0
      %v2794 = vmax.f32 %v2778, 0.0
      %v2795 = vmax.f32 %v2779, 0.0
      %v2796 = vmax.f32 %v2780, 0.0
      %v2797 = vmax.f32 %v2781, 0.0
      %v2798 = vmax.f32 %v2782, 0.0
      %v2799 = vmax.f32 %v2783, 0.0
      %v2800 = vmax.f32 %v2784, 0.0
      %v2801 = vmax.f32 %v2785, 0.0
      %v2802 = vmax.f32 %v2786, 0.0
      %v2803 = vmax.f32 %v2787, 0.0
      %v2804 = vpack.c.bf16 %v2789, %v2788
      %v2805 = vpack.c.bf16 %v2791, %v2790
      %v2806 = vpack.c.bf16 %v2793, %v2792
      %v2807 = vpack.c.bf16 %v2795, %v2794
      %v2808 = vpack.c.bf16 %v2797, %v2796
      %v2809 = vpack.c.bf16 %v2799, %v2798
      %v2810 = vpack.c.bf16 %v2801, %v2800
      %v2811 = vpack.c.bf16 %v2803, %v2802
      %v2820 = vunpack.c.l.b16 %v2804
      %v2821 = vunpack.c.h.b16 %v2804
      %v2822 = vunpack.c.l.b16 %v2805
      %v2823 = vunpack.c.h.b16 %v2805
      %v2824 = vunpack.c.l.b16 %v2806
      %v2825 = vunpack.c.h.b16 %v2806
      %v2826 = vunpack.c.l.b16 %v2807
      %v2827 = vunpack.c.h.b16 %v2807
      %v2828 = vunpack.c.l.b16 %v2808
      %v2829 = vunpack.c.h.b16 %v2808
      %v2830 = vunpack.c.l.b16 %v2809
      %v2831 = vunpack.c.h.b16 %v2809
      %v2832 = vunpack.c.l.b16 %v2810
      %v2833 = vunpack.c.h.b16 %v2810
      %v2834 = vunpack.c.l.b16 %v2811
      %v2835 = vunpack.c.h.b16 %v2811
      %v2836 = vpack.c.b16 %v2820, %v2820
      %v2837 = vpack.c.b16 %v2821, %v2821
      %v2838 = vpack.c.b16 %v2822, %v2822
      %v2839 = vpack.c.b16 %v2823, %v2823
      %v2840 = vpack.c.b16 %v2824, %v2824
      %v2841 = vpack.c.b16 %v2825, %v2825
      %v2842 = vpack.c.b16 %v2826, %v2826
      %v2843 = vpack.c.b16 %v2827, %v2827
      %v2844 = vpack.c.b16 %v2828, %v2828
      %v2845 = vpack.c.b16 %v2829, %v2829
      %v2846 = vpack.c.b16 %v2830, %v2830
      %v2847 = vpack.c.b16 %v2831, %v2831
      %v2848 = vpack.c.b16 %v2832, %v2832
      %v2849 = vpack.c.b16 %v2833, %v2833
      %v2850 = vpack.c.b16 %v2834, %v2834
      %v2851 = vpack.c.b16 %v2835, %v2835
      %vm2868 = vcmask 125952
      %2869 = vst.msk [vmem:[%s300] sm:$0xf] %vm2868, %v2836
      %2870 = vst.msk [vmem:[%s300 + $0x4] sm:$0xf] %vm2868, %v2837
      %2871 = vst.msk [vmem:[%s300 + $0x8] sm:$0xf] %vm2868, %v2838
      %2872 = vst.msk [vmem:[%s300 + $0xc] sm:$0xf] %vm2868, %v2839
      %2873 = vst.msk [vmem:[%s300 + $0x10] sm:$0xf] %vm2868, %v2840
      %2874 = vst.msk [vmem:[%s300 + $0x14] sm:$0xf] %vm2868, %v2841
      %2875 = vst.msk [vmem:[%s300 + $0x18] sm:$0xf] %vm2868, %v2842
      %2876 = vst.msk [vmem:[%s300 + $0x1c] sm:$0xf] %vm2868, %v2843
      %2877 = vst.msk [vmem:[%s300 + $0x20] sm:$0xf] %vm2868, %v2844
      %2878 = vst.msk [vmem:[%s300 + $0x24] sm:$0xf] %vm2868, %v2845
      %2879 = vst.msk [vmem:[%s300 + $0x28] sm:$0xf] %vm2868, %v2846
      %2880 = vst.msk [vmem:[%s300 + $0x2c] sm:$0xf] %vm2868, %v2847
      %2881 = vst.msk [vmem:[%s300 + $0x30] sm:$0xf] %vm2868, %v2848
      %2882 = vst.msk [vmem:[%s300 + $0x34] sm:$0xf] %vm2868, %v2849
      %2883 = vst.msk [vmem:[%s300 + $0x38] sm:$0xf] %vm2868, %v2850
      %2884 = vst.msk [vmem:[%s300 + $0x3c] sm:$0xf] %vm2868, %v2851
      %s2885 = smul.u32 16, %s23
      %p2886 = scmp.lt.s32.totalorder %s22, 1
      %s2887 = scalar_select %p2886, %s22, 1
      %p2888 = scmp.lt.s32.totalorder %s2885, 31
      %s2889 = scalar_select %p2888, %s2885, 31
      %s2890 = smul.addr %s2887, 32
      %s2891 = sadd.s32 %s2889, %s2890
      %s2892 = smul.addr %s2891, 4
      %s2893 = scalar_lea.vmem %s7, %s2892
      // Predicated region
      $region49: #{bottleneck_forward.1} parent=47 // pred_check
        %p2894 = pneg %p202
      $region50: #{bottleneck_forward.1} parent=47 // pred_check_branch
        %2896 = sbr.rel (%p2894) target = $region52
      $region51: #{bottleneck_forward.1} parent=47 // pred_region
        %s2897 = smul.u32 16, %s23
      $region52: #{bottleneck_forward.1} parent=47 // pred_fallthru
        _
    $region48: #{bottleneck_forward.1} parent=5 // pred_fallthru
      _
    %p2898 = scmp.le.s32.totalorder 2, %s13
    // Predicated region
    $region53: #{bottleneck_forward.1} parent=5 // pred_check
      %p2899 = pneg %p2898
    $region54: #{bottleneck_forward.1} parent=5 // pred_check_branch
      %2901 = sbr.rel (%p2899) target = $region56
    $region55: #{bottleneck_forward.1} parent=5 // pred_region
      %s2902 = ssub.s32 %s13, 2
      // Predicated region
      $region57: #{bottleneck_forward.1} parent=55 // pred_check
        %p2903 = pneg %p208
      $region58: #{bottleneck_forward.1} parent=55 // pred_check_branch
        %2905 = sbr.rel (%p2903) target = $region60
      $region59: #{bottleneck_forward.1} parent=55 // pred_region
        %s2906 = smul.u32 16, %s25
        %p2907 = scmp.lt.s32.totalorder %s24, 1
        %s2908 = scalar_select %p2907, %s24, 1
        %p2909 = scmp.lt.s32.totalorder %s2906, 31
        %s2910 = scalar_select %p2909, %s2906, 31
        %s2911 = smul.addr %s2908, 32
        %s2912 = sadd.s32 %s2910, %s2911
        %s2913 = smul.addr %s2912, 4
        %s2914 = scalar_lea.vmem %s7, %s2913
      $region60: #{bottleneck_forward.1} parent=55 // pred_fallthru
        _
    $region56: #{bottleneck_forward.1} parent=5 // pred_fallthru
      _
  $region6: #{bottleneck_forward.1} parent=0 // loop_footer
    %s17 = sadd.s32 1, %s13
  $region7: #{bottleneck_forward.1} parent=0 // loop_footer_branch
    %12 = sbr.rel target = $region3
  $region8: #{bottleneck_forward.1} parent=0 // loop_exit
    _

</llo_original>
